<compile_context>
chip_gen: v5e
topology: v5e:2x2
jax: 0.10.0
libtpu: 0.0.40
codegen_flags: <defaults>
</compile_context>

<pallas_src>
import jax
import jax.numpy as jnp
from jax import lax
from jax.experimental import pallas as pl
from jax.experimental.pallas import tpu as pltpu


def mlp_kernel(x_ref, w1t_ref, b1_ref, w2_ref, b2_ref, o_ref):
    # x_ref  : (TB, din) bf16  streamed batch tile (contiguous input rows)
    # w1t_ref: (m, din)  bf16  resident W1^T
    # b1_ref : (m, 1)    f32   resident bias (broadcast over lanes)
    # w2_ref : (1, m)    f32   resident layer-2 weights, lane-dense row
    # b2_ref : (1, 1)    f32   SMEM scalar
    # o_ref  : (1, TB)   f32   lane-dense output tile (batch on the lane axis)
    #
    # Layer 1 on the MXU: contract the din axes of W1^T and the x tile
    # ("NT" matmul, no wrapper-side transpose of x) -> h is (m, TB) with the
    # batch on the 128-lane axis; accumulate in f32.
    h = lax.dot_general(
        w1t_ref[...], x_ref[...],
        dimension_numbers=(((1,), (1,)), ((), ())),
        preferred_element_type=jnp.float32,
    )
    h = jnp.maximum(h + b1_ref[...], 0.0)          # bias + ReLU, full-lane VPU
    # Layer 2 on the MXU: (1, m) @ (m, TB) with K = m -> lane-dense (1, TB).
    y = jnp.dot(w2_ref[...], h, preferred_element_type=jnp.float32)
    o_ref[...] = (y + b2_ref[0, 0]).astype(o_ref.dtype)


def mlp_forward(x, w1, b1, w2, b2, *, block_b=None, compute_dtype=jnp.bfloat16):
    """x: (B, 10), w1: (10, m), b1: (m,), w2: (m, 1), b2: (1,).  Returns (B, 1) f32."""
    B, din = x.shape
    m = w1.shape[1]

    if block_b is None:
        block_b = B
        if B % 256 == 0:
            block_b = B // 2        # grid of 2: engages both v7x TensorCores
        while block_b > 2048 and block_b % 256 == 0:
            block_b //= 2           # VMEM cap: h is (m, block_b) f32
    if block_b != B:
        assert block_b % 128 == 0, "block_b must be a multiple of 128 (lane tiling)"
        assert B % block_b == 0, "pad the batch to a multiple of block_b"
    # TODO(synk): ragged batches would need pl.cdiv + masking; exact tiling required.

    # Activations stream in bf16 (halves the dominant x DMA); ideally x already
    # arrives in bf16 so this astype is a no-op.  Weights are cast once (tiny).
    x_c = x.astype(compute_dtype)                    # (B, din) contiguous row tiles
    w1_t = w1.T.astype(compute_dtype)                # (m, din) resident
    b1_c = b1.astype(jnp.float32).reshape(m, 1)      # (m, 1)   resident (lane-bcast)
    w2_r = w2.astype(jnp.float32).reshape(1, m)      # (1, m)   lane-dense row
    b2_s = b2.astype(jnp.float32).reshape(1, 1)      # (1, 1)   scalar -> SMEM

    grid = (B // block_b,)
    out = pl.pallas_call(
        mlp_kernel,
        out_shape=jax.ShapeDtypeStruct((1, B), jnp.float32),
        grid_spec=pltpu.PrefetchScalarGridSpec(
            num_scalar_prefetch=0,
            grid=grid,
            in_specs=[
                pl.BlockSpec((block_b, din), lambda i: (i, 0)),      # x tile (streamed)
                pl.BlockSpec((m, din), lambda i: (0, 0)),            # W1^T   (resident)
                pl.BlockSpec((m, 1), lambda i: (0, 0)),              # b1     (resident)
                pl.BlockSpec((1, m), lambda i: (0, 0)),              # w2 row (resident)
                pl.BlockSpec(memory_space=pltpu.MemorySpace.SMEM),   # b2 scalar
            ],
            out_specs=pl.BlockSpec((1, block_b), lambda i: (0, i)),  # lane-dense out
        ),
        compiler_params=pltpu.CompilerParams(
            dimension_semantics=("parallel",),
            vmem_limit_bytes=32 * 1024 * 1024,   # safe on v5e/v6e/v7x; footprint ~2 MB
        ),
    )(x_c, w1_t, b1_c, w2_r, b2_s)
    return out.reshape(B, 1)


def init_params(key, m=1024, din=10):
    # Deterministic init mimicking nn.Linear default (uniform +/- 1/sqrt(fan_in)).
    k1, k2, k3, k4 = jax.random.split(key, 4)
    bound1 = 1.0 / jnp.sqrt(din)
    bound2 = 1.0 / jnp.sqrt(m)
    w1 = jax.random.uniform(k1, (din, m), jnp.float32, -bound1, bound1)
    b1 = jax.random.uniform(k2, (m,), jnp.float32, -bound1, bound1)
    w2 = jax.random.uniform(k3, (m, 1), jnp.float32, -bound2, bound2)
    b2 = jax.random.uniform(k4, (1,), jnp.float32, -bound2, bound2)
    return w1, b1, w2, b2


if __name__ == "__main__":
    key = jax.random.PRNGKey(0)
    kx, kp = jax.random.split(key)

    B, din, m = 256, 10, 1024          # m=1024 matches the PyTorch module default
    # Activations arrive already in bf16 (so the wrapper's cast is a no-op and
    # x is read exactly once from HBM); weights follow nn.Linear's f32 init.
    x = jax.random.normal(kx, (B, din), jnp.float32).astype(jnp.bfloat16)
    w1, b1, w2, b2 = init_params(kp, m=m, din=din)

    out = jax.block_until_ready(mlp_forward(x, w1, b1, w2, b2))   # grid = (2,)
    assert out.shape == (B, 1)

    # f32 reference on the same (bf16) inputs; tolerance loosened to cover the
    # bf16 W1 operand and MXU pass precision (per review correctness note).
    hp = jax.lax.Precision.HIGHEST
    xf = x.astype(jnp.float32)
    ref = jnp.maximum(jnp.dot(xf, w1, precision=hp) + b1, 0.0)
    ref = jnp.dot(ref, w2, precision=hp) + b2
    max_err = jnp.max(jnp.abs(out - ref))
    assert jnp.allclose(out, ref, atol=2e-2, rtol=2e-2), f"max abs err {max_err:.3e}"

    print("KERNEL_OK")
</pallas_src>

<mosaic_0001>
module attributes {stable_mosaic.version = 11 : i64} {
  func.func @mlp_kernel(%arg0: i32, %arg1: memref<128x10xbf16, #tpu.memory_space<vmem>>, %arg2: memref<1024x10xbf16, #tpu.memory_space<vmem>>, %arg3: memref<1024x1xf32, #tpu.memory_space<vmem>>, %arg4: memref<1x1024xf32, #tpu.memory_space<vmem>>, %arg5: memref<1x1xf32, #tpu.memory_space<smem>>, %arg6: memref<1x128xf32, #tpu.memory_space<vmem>>) attributes {dimension_semantics = [#tpu.dimension_semantics<parallel>], iteration_bounds = array<i64: 2>, scalar_prefetch = 0 : i64, scratch_operands = 0 : i64, tpu.core_type = #tpu.core_type<tc>, window_params = [{transform_indices = @transform_0, window_bounds = array<i64: 128, 10>}, {pipeline_mode = #tpu.pipeline_mode<synchronous>, transform_indices = @transform_1, window_bounds = array<i64: 1024, 10>}, {pipeline_mode = #tpu.pipeline_mode<synchronous>, transform_indices = @transform_2, window_bounds = array<i64: 1024, 1>}, {pipeline_mode = #tpu.pipeline_mode<synchronous>, transform_indices = @transform_3, window_bounds = array<i64: 1, 1024>}, {transform_indices = @transform_4, window_bounds = array<i64: 1, 1>}, {transform_indices = @transform_5, window_bounds = array<i64: 1, 128>}]} {
    %c0 = arith.constant 0 : index
    %c0_0 = arith.constant 0 : index
    %0 = vector.load %arg2[%c0, %c0_0] : memref<1024x10xbf16, #tpu.memory_space<vmem>>, vector<1024x10xbf16>
    %c0_1 = arith.constant 0 : index
    %c0_2 = arith.constant 0 : index
    %1 = vector.load %arg1[%c0_1, %c0_2] : memref<128x10xbf16, #tpu.memory_space<vmem>>, vector<128x10xbf16>
    %cst = arith.constant dense<0.000000e+00> : vector<1024x128xf32>
    %2 = tpu.matmul %0, %1, %cst {dimension_numbers = #tpu.dot_dimension_numbers<[1], [1], [0], [0], [0, 0, 1, 0], [], []>} : vector<1024x10xbf16>, vector<128x10xbf16>, vector<1024x128xf32> -> vector<1024x128xf32>
    %c0_3 = arith.constant 0 : index
    %c0_4 = arith.constant 0 : index
    %3 = vector.load %arg3[%c0_3, %c0_4] : memref<1024x1xf32, #tpu.memory_space<vmem>>, vector<1024x1xf32>
    %4 = vector.broadcast %3 : vector<1024x1xf32> to vector<1024x128xf32>
    %5 = arith.addf %2, %4 : vector<1024x128xf32>
    %cst_5 = arith.constant 0.000000e+00 : f32
    %6 = vector.broadcast %cst_5 : f32 to vector<1024x128xf32>
    %7 = arith.maximumf %5, %6 : vector<1024x128xf32>
    %c0_6 = arith.constant 0 : index
    %c0_7 = arith.constant 0 : index
    %8 = vector.load %arg4[%c0_6, %c0_7] : memref<1x1024xf32, #tpu.memory_space<vmem>>, vector<1x1024xf32>
    %cst_8 = arith.constant dense<0.000000e+00> : vector<1x128xf32>
    %9 = tpu.matmul %8, %7, %cst_8 {dimension_numbers = #tpu.dot_dimension_numbers<[1], [0], [0], [1], [0, 0, 1, 1], [], []>} : vector<1x1024xf32>, vector<1024x128xf32>, vector<1x128xf32> -> vector<1x128xf32>
    %c0_9 = arith.constant 0 : index
    %c0_10 = arith.constant 0 : index
    %10 = memref.load %arg5[%c0_9, %c0_10] : memref<1x1xf32, #tpu.memory_space<smem>>
    %11 = vector.broadcast %10 : f32 to vector<1x128xf32>
    %12 = arith.addf %9, %11 : vector<1x128xf32>
    %c0_11 = arith.constant 0 : index
    %c0_12 = arith.constant 0 : index
    %13 = vector.load %arg6[%c0_11, %c0_12] : memref<1x128xf32, #tpu.memory_space<vmem>>, vector<1x128xf32>
    tpu.vector_store %arg6[%c0_11, %c0_12], %12 {strides = array<i32>} : memref<1x128xf32, #tpu.memory_space<vmem>>, vector<1x128xf32>,
    return
  }
  func.func @transform_0(%arg0: i32) -> (i32, i32) {
    %c0_i32 = arith.constant 0 : i32
    %c0_i32_0 = arith.constant 0 : i32
    return %arg0, %c0_i32 : i32, i32
  }
  func.func @transform_1(%arg0: i32) -> (i32, i32) {
    %c0_i32 = arith.constant 0 : i32
    %c0_i32_0 = arith.constant 0 : i32
    %c0_i32_1 = arith.constant 0 : i32
    return %c0_i32, %c0_i32_0 : i32, i32
  }
  func.func @transform_2(%arg0: i32) -> (i32, i32) {
    %c0_i32 = arith.constant 0 : i32
    %c0_i32_0 = arith.constant 0 : i32
    %c0_i32_1 = arith.constant 0 : i32
    return %c0_i32, %c0_i32_0 : i32, i32
  }
  func.func @transform_3(%arg0: i32) -> (i32, i32) {
    %c0_i32 = arith.constant 0 : i32
    %c0_i32_0 = arith.constant 0 : i32
    %c0_i32_1 = arith.constant 0 : i32
    return %c0_i32, %c0_i32_0 : i32, i32
  }
  func.func @transform_4(%arg0: i32) -> (i32, i32) {
    %c0_i32 = arith.constant 0 : i32
    %c0_i32_0 = arith.constant 0 : i32
    %c0_i32_1 = arith.constant 0 : i32
    return %c0_i32, %c0_i32_0 : i32, i32
  }
  func.func @transform_5(%arg0: i32) -> (i32, i32) {
    %c0_i32 = arith.constant 0 : i32
    %c0_i32_0 = arith.constant 0 : i32
    return %c0_i32, %arg0 : i32, i32
  }
}

</mosaic_0001>

<llo_original>
// kernel: tpu_custom_call.1
$region0: #{tpu_custom_call.1}
  #allocation0 [shape = 'u32[]', space=smem, size = 0x4, offset = 0x4, fixed_abs, tag = 'smem constant byte address 0x4 - core index']
  #allocation1 [shape = 'u32[72,128]{1,0:T(1,128)}', space=vmem, size = 0x9000, scoped, tag = 'internal scratch']
  #allocation2 [shape = 'f32[1,1]{1,0:T(1,128)S(6)}', space=smem, size = 0x200, scoped, tag = 'scoped memory for tpu_custom_call.1']
  %s0 = inlined_call_operand.vmem [shape: bf16[256,10], index: 0, kind: input, shape index: {}]
  %s1 = inlined_call_operand.vmem [shape: bf16[1024,10], index: 1, kind: input, shape index: {}]
  %s2 = inlined_call_operand.vmem [shape: f32[1024,1], index: 2, kind: input, shape index: {}]
  %s3 = inlined_call_operand.vmem [shape: f32[1,1024], index: 3, kind: input, shape index: {}]
  %s4 = inlined_call_operand.<no memory space> [shape: f32[1,1], index: 4, kind: input, shape index: {}]
  %s5 = inlined_call_operand.hbm [shape: f32[1,256], index: 5, kind: output, shape index: {}]
  %s6 = sld [smem:[#allocation0]]
  $region53: #{tpu_custom_call.1} parent=0
    _
  %s8 = ssub.s32 1, %s6
  %s9 = scalar_select 0, %s8, %s6
  %10 = sst [smem:[#allocation2]] %s4
  $region1: #{tpu_custom_call.1} parent=0
    #allocation3 [shape = 'u8[1024]{0}', space=vmem, size = 0x400, scoped, tag = 'output window, operand 0']
    #allocation4 [shape = 's32[2]{0}', space=sflag, size = 0x8, scoped, tag = 'scoped memory for tpu_custom_call.1']
    %11 = vsyncpa [#allocation4], 0
    %s12 = scalar_lea.sflag [#allocation4], 1
    %13 = vsyncpa %s12, 0
    loop: start=0, step=1, limit=4
    $region2: #{tpu_custom_call.1} parent=1 // loop_pre_header
      _
    $region3: #{tpu_custom_call.1} parent=1 // loop_header
      %s15 = sphi 0, %s19
      %p16 = scmp.ge.s32.totalorder %s15, 4
      %s25 = sphi 0, %s27
      %s28 = sphi 0, %s25
      %s29 = sphi 0, %s28
      %s45 = sphi 0, %s29
      %s49 = sphi 0, %s49
      %s51 = sphi 0, %s49
      %s52 = sphi 0, %s51
      %s66 = sphi 0, %s52
      %s70 = sphi 0, %s70
      %s72 = sphi 0, %s70
      %s73 = sphi 0, %s72
      %s87 = sphi 0, %s73
      %s91 = sphi 0, %s91
      %s93 = sphi 0, %s91
      %s94 = sphi 0, %s93
      %s108 = sphi 0, %s94
      %s112 = sphi 0, %s112
      %s114 = sphi 0, %s112
      %s115 = sphi 0, %s114
      %s129 = sphi 0, %s115
      %s135 = sphi 0, %s137
      %s138 = sphi 0, %s135
      %s139 = sphi 0, %s138
      %s155 = sphi 0, %s139
    $region4: #{tpu_custom_call.1} parent=1 // loop_header_branch
      %18 = sbr.rel (%p16) target = $region8
    $region5: #{tpu_custom_call.1} parent=1 // loop_body
      %s20 = ssub.s32 %s15, 1
      %s21 = ssub.s32 %s15, 2
      %s22 = sadd.s32 %s15, 1
      %s23 = ssub.s32 %s15, %s22
      %p24 = scmp.eq.s32.totalorder %s23, 0
      %s26 = sadd.s32 %s25, 1
      %s27 = scalar_select %p24, %s25, %s26
      %p30 = pneg %p24
      %p31 = scmp.eq.s32.totalorder %s15, 1
      %p32 = por %p30, %p31
      %p33 = scmp.ne.s32.totalorder %s25, %s28
      %p34 = scmp.eq.s32.totalorder %s15, 0
      %p35 = por %p33, %p34
      %p36 = scmp.ne.s32.totalorder %s25, %s28
      %p37 = scmp.eq.s32.totalorder %s20, 1
      %p38 = por %p36, %p37
      %p39 = scmp.ne.s32.totalorder %s28, %s29
      %p40 = scmp.eq.s32.totalorder %s20, 0
      %p41 = por %p39, %p40
      %p42 = scmp.ne.s32.totalorder %s28, %s29
      %p43 = scmp.eq.s32.totalorder %s21, 1
      %p44 = por %p42, %p43
      %p46 = scmp.ne.s32.totalorder %s29, %s45
      %p47 = scmp.eq.s32.totalorder %s21, 0
      %p48 = por %p46, %p47
      %s50 = sadd.s32 %s49, 1
      %p53 = scmp.eq.s32.totalorder %s15, 1
      %p54 = scmp.ne.s32.totalorder %s49, %s51
      %p55 = scmp.eq.s32.totalorder %s15, 0
      %p56 = por %p54, %p55
      %p57 = scmp.ne.s32.totalorder %s49, %s51
      %p58 = scmp.eq.s32.totalorder %s20, 1
      %p59 = por %p57, %p58
      %p60 = scmp.ne.s32.totalorder %s51, %s52
      %p61 = scmp.eq.s32.totalorder %s20, 0
      %p62 = por %p60, %p61
      %p63 = scmp.ne.s32.totalorder %s51, %s52
      %p64 = scmp.eq.s32.totalorder %s21, 1
      %p65 = por %p63, %p64
      %p67 = scmp.ne.s32.totalorder %s52, %s66
      %p68 = scmp.eq.s32.totalorder %s21, 0
      %p69 = por %p67, %p68
      %s71 = sadd.s32 %s70, 1
      %p74 = scmp.eq.s32.totalorder %s15, 1
      %p75 = scmp.ne.s32.totalorder %s70, %s72
      %p76 = scmp.eq.s32.totalorder %s15, 0
      %p77 = por %p75, %p76
      %p78 = scmp.ne.s32.totalorder %s70, %s72
      %p79 = scmp.eq.s32.totalorder %s20, 1
      %p80 = por %p78, %p79
      %p81 = scmp.ne.s32.totalorder %s72, %s73
      %p82 = scmp.eq.s32.totalorder %s20, 0
      %p83 = por %p81, %p82
      %p84 = scmp.ne.s32.totalorder %s72, %s73
      %p85 = scmp.eq.s32.totalorder %s21, 1
      %p86 = por %p84, %p85
      %p88 = scmp.ne.s32.totalorder %s73, %s87
      %p89 = scmp.eq.s32.totalorder %s21, 0
      %p90 = por %p88, %p89
      %s92 = sadd.s32 %s91, 1
      %p95 = scmp.eq.s32.totalorder %s15, 1
      %p96 = scmp.ne.s32.totalorder %s91, %s93
      %p97 = scmp.eq.s32.totalorder %s15, 0
      %p98 = por %p96, %p97
      %p99 = scmp.ne.s32.totalorder %s91, %s93
      %p100 = scmp.eq.s32.totalorder %s20, 1
      %p101 = por %p99, %p100
      %p102 = scmp.ne.s32.totalorder %s93, %s94
      %p103 = scmp.eq.s32.totalorder %s20, 0
      %p104 = por %p102, %p103
      %p105 = scmp.ne.s32.totalorder %s93, %s94
      %p106 = scmp.eq.s32.totalorder %s21, 1
      %p107 = por %p105, %p106
      %p109 = scmp.ne.s32.totalorder %s94, %s108
      %p110 = scmp.eq.s32.totalorder %s21, 0
      %p111 = por %p109, %p110
      %s113 = sadd.s32 %s112, 1
      %p116 = scmp.eq.s32.totalorder %s15, 1
      %p117 = scmp.ne.s32.totalorder %s112, %s114
      %p118 = scmp.eq.s32.totalorder %s15, 0
      %p119 = por %p117, %p118
      %p120 = scmp.ne.s32.totalorder %s112, %s114
      %p121 = scmp.eq.s32.totalorder %s20, 1
      %p122 = por %p120, %p121
      %p123 = scmp.ne.s32.totalorder %s114, %s115
      %p124 = scmp.eq.s32.totalorder %s20, 0
      %p125 = por %p123, %p124
      %p126 = scmp.ne.s32.totalorder %s114, %s115
      %p127 = scmp.eq.s32.totalorder %s21, 1
      %p128 = por %p126, %p127
      %p130 = scmp.ne.s32.totalorder %s115, %s129
      %p131 = scmp.eq.s32.totalorder %s21, 0
      %p132 = por %p130, %p131
      %s133 = ssub.s32 %s15, %s22
      %p134 = scmp.eq.s32.totalorder %s133, 0
      %s136 = sadd.s32 %s135, 1
      %s137 = scalar_select %p134, %s135, %s136
      %p140 = pneg %p134
      %p141 = scmp.eq.s32.totalorder %s15, 1
      %p142 = por %p140, %p141
      %p143 = scmp.ne.s32.totalorder %s135, %s138
      %p144 = scmp.eq.s32.totalorder %s15, 0
      %p145 = por %p143, %p144
      %p146 = scmp.ne.s32.totalorder %s135, %s138
      %p147 = scmp.eq.s32.totalorder %s20, 1
      %p148 = por %p146, %p147
      %p149 = scmp.ne.s32.totalorder %s138, %s139
      %p150 = scmp.eq.s32.totalorder %s20, 0
      %p151 = por %p149, %p150
      %p152 = scmp.ne.s32.totalorder %s138, %s139
      %p153 = scmp.eq.s32.totalorder %s21, 1
      %p154 = por %p152, %p153
      %p156 = scmp.ne.s32.totalorder %s139, %s155
      %p157 = scmp.eq.s32.totalorder %s21, 0
      %p158 = por %p156, %p157
      %p159 = scmp.le.s32.totalorder 1, %s15
      %p160 = scmp.lt.s32.totalorder %s15, 3
      %p161 = pnand %p159, %p160
      %p162 = pneg %p161
      // Predicated region
      $region9: #{tpu_custom_call.1} parent=5 // pred_check
        _
      $region10: #{tpu_custom_call.1} parent=5 // pred_check_branch
        %164 = sbr.rel (%p161) target = $region12
      $region11: #{tpu_custom_call.1} parent=5 // pred_region
        %s165 = ssub.s32 %s15, 1
        // Predicated region
        $region13: #{tpu_custom_call.1} parent=11 // pred_check
          %p166 = pneg %p62
        $region14: #{tpu_custom_call.1} parent=11 // pred_check_branch
          %168 = sbr.rel (%p166) target = $region16
        $region15: #{tpu_custom_call.1} parent=11 // pred_region
          _
        $region16: #{tpu_custom_call.1} parent=11 // pred_fallthru
          _
        // Predicated region
        $region17: #{tpu_custom_call.1} parent=11 // pred_check
          %p169 = pneg %p83
        $region18: #{tpu_custom_call.1} parent=11 // pred_check_branch
          %171 = sbr.rel (%p169) target = $region20
        $region19: #{tpu_custom_call.1} parent=11 // pred_region
          _
        $region20: #{tpu_custom_call.1} parent=11 // pred_fallthru
          _
        // Predicated region
        $region21: #{tpu_custom_call.1} parent=11 // pred_check
          %p172 = pneg %p104
        $region22: #{tpu_custom_call.1} parent=11 // pred_check_branch
          %174 = sbr.rel (%p172) target = $region24
        $region23: #{tpu_custom_call.1} parent=11 // pred_region
          _
        $region24: #{tpu_custom_call.1} parent=11 // pred_fallthru
          _
        // Predicated region
        $region25: #{tpu_custom_call.1} parent=11 // pred_check
          %p175 = pneg %p125
        $region26: #{tpu_custom_call.1} parent=11 // pred_check_branch
          %177 = sbr.rel (%p175) target = $region28
        $region27: #{tpu_custom_call.1} parent=11 // pred_region
          _
        $region28: #{tpu_custom_call.1} parent=11 // pred_fallthru
          _
      $region12: #{tpu_custom_call.1} parent=5 // pred_fallthru
        _
      %p178 = scmp.lt.s32.totalorder %s15, 2
      // Predicated region
      $region29: #{tpu_custom_call.1} parent=5 // pred_check
        %p179 = pneg %p178
      $region30: #{tpu_custom_call.1} parent=5 // pred_check_branch
        %181 = sbr.rel (%p179) target = $region32
      $region31: #{tpu_custom_call.1} parent=5 // pred_region
        // Predicated region
        $region33: #{tpu_custom_call.1} parent=31 // pred_check
          %p182 = pneg %p35
        $region34: #{tpu_custom_call.1} parent=31 // pred_check_branch
          %184 = sbr.rel (%p182) target = $region36
        $region35: #{tpu_custom_call.1} parent=31 // pred_region
          %s185 = smul.u32 16, %s15
          %p186 = scmp.lt.s32.totalorder %s185, 31
          %s187 = scalar_select %p186, %s185, 31
          %s188 = smul.addr %s187, 4
          %s189 = scalar_lea.vmem %s0, %s188
          %s190 = smul.u32 16, %s15
        $region36: #{tpu_custom_call.1} parent=31 // pred_fallthru
          _
      $region32: #{tpu_custom_call.1} parent=5 // pred_fallthru
        _
      %p191 = scmp.le.s32.totalorder 1, %s15
      %p192 = scmp.lt.s32.totalorder %s15, 3
      %p193 = pnand %p191, %p192
      %p194 = pneg %p193
      // Predicated region
      $region37: #{tpu_custom_call.1} parent=5 // pred_check
        _
      $region38: #{tpu_custom_call.1} parent=5 // pred_check_branch
        %196 = sbr.rel (%p193) target = $region40
      $region39: #{tpu_custom_call.1} parent=5 // pred_region
        %s197 = ssub.s32 %s15, 1
        %s198 = smul.u32 16, %s20
        %p199 = scmp.lt.s32.totalorder %s198, 31
        %s200 = scalar_select %p199, %s198, 31
        %s201 = smul.addr %s200, 4
        %s202 = scalar_lea.vmem %s0, %s201
        %p203 = pneg %p41
        %p204 = pneg %p38
        %p205 = pneg %p62
        %p206 = pneg %p59
        %p207 = pneg %p83
        %p208 = pneg %p80
        %p209 = pneg %p104
        %p210 = pneg %p101
        %p211 = pneg %p125
        %p212 = pneg %p122
        %p213 = pneg %p151
        %p214 = pneg %p148
        %s215 = sand.u32 %s138, 1
        %s216 = scalar_lea.sflag [#allocation4], %s215
        %s217 = sand.u32 %s138, 1
        %s218 = scalar_lea.vmem [#allocation3], %s217
        %s219 = smul.u32 16, %s20
        %p220 = scmp.lt.s32.totalorder %s219, 31
        %s221 = scalar_select %p220, %s219, 31
        %s222 = smul.addr %s221, 4
        %s223 = scalar_lea.vmem %s0, %s222
        %s224 = smul.u32 16, %s20
        %v225 = vld [vmem:[%s1] sm:$0xf]
        %v226 = vld [vmem:[%s1 + $0x4] sm:$0xf]
        %v227 = vld [vmem:[%s1 + $0x8] sm:$0xf]
        %v228 = vld [vmem:[%s1 + $0xc] sm:$0xf]
        %v229 = vld [vmem:[%s1 + $0x10] sm:$0xf]
        %v230 = vld [vmem:[%s1 + $0x14] sm:$0xf]
        %v231 = vld [vmem:[%s1 + $0x18] sm:$0xf]
        %v232 = vld [vmem:[%s1 + $0x1c] sm:$0xf]
        %v233 = vld [vmem:[%s1 + $0x20] sm:$0xf]
        %v234 = vld [vmem:[%s1 + $0x24] sm:$0xf]
        %v235 = vld [vmem:[%s1 + $0x28] sm:$0xf]
        %v236 = vld [vmem:[%s1 + $0x2c] sm:$0xf]
        %v237 = vld [vmem:[%s1 + $0x30] sm:$0xf]
        %v238 = vld [vmem:[%s1 + $0x34] sm:$0xf]
        %v239 = vld [vmem:[%s1 + $0x38] sm:$0xf]
        %v240 = vld [vmem:[%s1 + $0x3c] sm:$0xf]
        %v241 = vld [vmem:[%s1 + $0x40] sm:$0xf]
        %v242 = vld [vmem:[%s1 + $0x44] sm:$0xf]
        %v243 = vld [vmem:[%s1 + $0x48] sm:$0xf]
        %v244 = vld [vmem:[%s1 + $0x4c] sm:$0xf]
        %v245 = vld [vmem:[%s1 + $0x50] sm:$0xf]
        %v246 = vld [vmem:[%s1 + $0x54] sm:$0xf]
        %v247 = vld [vmem:[%s1 + $0x58] sm:$0xf]
        %v248 = vld [vmem:[%s1 + $0x5c] sm:$0xf]
        %v249 = vld [vmem:[%s1 + $0x60] sm:$0xf]
        %v250 = vld [vmem:[%s1 + $0x64] sm:$0xf]
        %v251 = vld [vmem:[%s1 + $0x68] sm:$0xf]
        %v252 = vld [vmem:[%s1 + $0x6c] sm:$0xf]
        %v253 = vld [vmem:[%s1 + $0x70] sm:$0xf]
        %v254 = vld [vmem:[%s1 + $0x74] sm:$0xf]
        %v255 = vld [vmem:[%s1 + $0x78] sm:$0xf]
        %v256 = vld [vmem:[%s1 + $0x7c] sm:$0xf]
        %v257 = vld [vmem:[%s1 + $0x80] sm:$0xf]
        %v258 = vld [vmem:[%s1 + $0x84] sm:$0xf]
        %v259 = vld [vmem:[%s1 + $0x88] sm:$0xf]
        %v260 = vld [vmem:[%s1 + $0x8c] sm:$0xf]
        %v261 = vld [vmem:[%s1 + $0x90] sm:$0xf]
        %v262 = vld [vmem:[%s1 + $0x94] sm:$0xf]
        %v263 = vld [vmem:[%s1 + $0x98] sm:$0xf]
        %v264 = vld [vmem:[%s1 + $0x9c] sm:$0xf]
        %v265 = vld [vmem:[%s1 + $0xa0] sm:$0xf]
        %v266 = vld [vmem:[%s1 + $0xa4] sm:$0xf]
        %v267 = vld [vmem:[%s1 + $0xa8] sm:$0xf]
        %v268 = vld [vmem:[%s1 + $0xac] sm:$0xf]
        %v269 = vld [vmem:[%s1 + $0xb0] sm:$0xf]
        %v270 = vld [vmem:[%s1 + $0xb4] sm:$0xf]
        %v271 = vld [vmem:[%s1 + $0xb8] sm:$0xf]
        %v272 = vld [vmem:[%s1 + $0xbc] sm:$0xf]
        %v273 = vld [vmem:[%s1 + $0xc0] sm:$0xf]
        %v274 = vld [vmem:[%s1 + $0xc4] sm:$0xf]
        %v275 = vld [vmem:[%s1 + $0xc8] sm:$0xf]
        %v276 = vld [vmem:[%s1 + $0xcc] sm:$0xf]
        %v277 = vld [vmem:[%s1 + $0xd0] sm:$0xf]
        %v278 = vld [vmem:[%s1 + $0xd4] sm:$0xf]
        %v279 = vld [vmem:[%s1 + $0xd8] sm:$0xf]
        %v280 = vld [vmem:[%s1 + $0xdc] sm:$0xf]
        %v281 = vld [vmem:[%s1 + $0xe0] sm:$0xf]
        %v282 = vld [vmem:[%s1 + $0xe4] sm:$0xf]
        %v283 = vld [vmem:[%s1 + $0xe8] sm:$0xf]
        %v284 = vld [vmem:[%s1 + $0xec] sm:$0xf]
        %v285 = vld [vmem:[%s1 + $0xf0] sm:$0xf]
        %v286 = vld [vmem:[%s1 + $0xf4] sm:$0xf]
        %v287 = vld [vmem:[%s1 + $0xf8] sm:$0xf]
        %v288 = vld [vmem:[%s1 + $0xfc] sm:$0xf]
        %v289 = vld [vmem:[%s1 + $0x100] sm:$0xf]
        %v290 = vld [vmem:[%s1 + $0x104] sm:$0xf]
        %v291 = vld [vmem:[%s1 + $0x108] sm:$0xf]
        %v292 = vld [vmem:[%s1 + $0x10c] sm:$0xf]
        %v293 = vld [vmem:[%s1 + $0x110] sm:$0xf]
        %v294 = vld [vmem:[%s1 + $0x114] sm:$0xf]
        %v295 = vld [vmem:[%s1 + $0x118] sm:$0xf]
        %v296 = vld [vmem:[%s1 + $0x11c] sm:$0xf]
        %v297 = vld [vmem:[%s1 + $0x120] sm:$0xf]
        %v298 = vld [vmem:[%s1 + $0x124] sm:$0xf]
        %v299 = vld [vmem:[%s1 + $0x128] sm:$0xf]
        %v300 = vld [vmem:[%s1 + $0x12c] sm:$0xf]
        %v301 = vld [vmem:[%s1 + $0x130] sm:$0xf]
        %v302 = vld [vmem:[%s1 + $0x134] sm:$0xf]
        %v303 = vld [vmem:[%s1 + $0x138] sm:$0xf]
        %v304 = vld [vmem:[%s1 + $0x13c] sm:$0xf]
        %v305 = vld [vmem:[%s1 + $0x140] sm:$0xf]
        %v306 = vld [vmem:[%s1 + $0x144] sm:$0xf]
        %v307 = vld [vmem:[%s1 + $0x148] sm:$0xf]
        %v308 = vld [vmem:[%s1 + $0x14c] sm:$0xf]
        %v309 = vld [vmem:[%s1 + $0x150] sm:$0xf]
        %v310 = vld [vmem:[%s1 + $0x154] sm:$0xf]
        %v311 = vld [vmem:[%s1 + $0x158] sm:$0xf]
        %v312 = vld [vmem:[%s1 + $0x15c] sm:$0xf]
        %v313 = vld [vmem:[%s1 + $0x160] sm:$0xf]
        %v314 = vld [vmem:[%s1 + $0x164] sm:$0xf]
        %v315 = vld [vmem:[%s1 + $0x168] sm:$0xf]
        %v316 = vld [vmem:[%s1 + $0x16c] sm:$0xf]
        %v317 = vld [vmem:[%s1 + $0x170] sm:$0xf]
        %v318 = vld [vmem:[%s1 + $0x174] sm:$0xf]
        %v319 = vld [vmem:[%s1 + $0x178] sm:$0xf]
        %v320 = vld [vmem:[%s1 + $0x17c] sm:$0xf]
        %v321 = vld [vmem:[%s1 + $0x180] sm:$0xf]
        %v322 = vld [vmem:[%s1 + $0x184] sm:$0xf]
        %v323 = vld [vmem:[%s1 + $0x188] sm:$0xf]
        %v324 = vld [vmem:[%s1 + $0x18c] sm:$0xf]
        %v325 = vld [vmem:[%s1 + $0x190] sm:$0xf]
        %v326 = vld [vmem:[%s1 + $0x194] sm:$0xf]
        %v327 = vld [vmem:[%s1 + $0x198] sm:$0xf]
        %v328 = vld [vmem:[%s1 + $0x19c] sm:$0xf]
        %v329 = vld [vmem:[%s1 + $0x1a0] sm:$0xf]
        %v330 = vld [vmem:[%s1 + $0x1a4] sm:$0xf]
        %v331 = vld [vmem:[%s1 + $0x1a8] sm:$0xf]
        %v332 = vld [vmem:[%s1 + $0x1ac] sm:$0xf]
        %v333 = vld [vmem:[%s1 + $0x1b0] sm:$0xf]
        %v334 = vld [vmem:[%s1 + $0x1b4] sm:$0xf]
        %v335 = vld [vmem:[%s1 + $0x1b8] sm:$0xf]
        %v336 = vld [vmem:[%s1 + $0x1bc] sm:$0xf]
        %v337 = vld [vmem:[%s1 + $0x1c0] sm:$0xf]
        %v338 = vld [vmem:[%s1 + $0x1c4] sm:$0xf]
        %v339 = vld [vmem:[%s1 + $0x1c8] sm:$0xf]
        %v340 = vld [vmem:[%s1 + $0x1cc] sm:$0xf]
        %v341 = vld [vmem:[%s1 + $0x1d0] sm:$0xf]
        %v342 = vld [vmem:[%s1 + $0x1d4] sm:$0xf]
        %v343 = vld [vmem:[%s1 + $0x1d8] sm:$0xf]
        %v344 = vld [vmem:[%s1 + $0x1dc] sm:$0xf]
        %v345 = vld [vmem:[%s1 + $0x1e0] sm:$0xf]
        %v346 = vld [vmem:[%s1 + $0x1e4] sm:$0xf]
        %v347 = vld [vmem:[%s1 + $0x1e8] sm:$0xf]
        %v348 = vld [vmem:[%s1 + $0x1ec] sm:$0xf]
        %v349 = vld [vmem:[%s1 + $0x1f0] sm:$0xf]
        %v350 = vld [vmem:[%s1 + $0x1f4] sm:$0xf]
        %v351 = vld [vmem:[%s1 + $0x1f8] sm:$0xf]
        %v352 = vld [vmem:[%s1 + $0x1fc] sm:$0xf]
        %v353 = vld [vmem:[%s223] sm:$0xf]
        %v354 = vld [vmem:[%s223 + $0x4] sm:$0xf]
        %v355 = vld [vmem:[%s223 + $0x8] sm:$0xf]
        %v356 = vld [vmem:[%s223 + $0xc] sm:$0xf]
        %v357 = vld [vmem:[%s223 + $0x10] sm:$0xf]
        %v358 = vld [vmem:[%s223 + $0x14] sm:$0xf]
        %v359 = vld [vmem:[%s223 + $0x18] sm:$0xf]
        %v360 = vld [vmem:[%s223 + $0x1c] sm:$0xf]
        %v361 = vld [vmem:[%s223 + $0x20] sm:$0xf]
        %v362 = vld [vmem:[%s223 + $0x24] sm:$0xf]
        %v363 = vld [vmem:[%s223 + $0x28] sm:$0xf]
        %v364 = vld [vmem:[%s223 + $0x2c] sm:$0xf]
        %v365 = vld [vmem:[%s223 + $0x30] sm:$0xf]
        %v366 = vld [vmem:[%s223 + $0x34] sm:$0xf]
        %v367 = vld [vmem:[%s223 + $0x38] sm:$0xf]
        %v368 = vld [vmem:[%s223 + $0x3c] sm:$0xf]
        %v369 = vld [vmem:[%s2] sm:$0xff]
        %v370 = vld [vmem:[%s2 + $0x8] sm:$0xff]
        %v371 = vld [vmem:[%s2 + $0x10] sm:$0xff]
        %v372 = vld [vmem:[%s2 + $0x18] sm:$0xff]
        %v373 = vld [vmem:[%s2 + $0x20] sm:$0xff]
        %v374 = vld [vmem:[%s2 + $0x28] sm:$0xff]
        %v375 = vld [vmem:[%s2 + $0x30] sm:$0xff]
        %v376 = vld [vmem:[%s2 + $0x38] sm:$0xff]
        %v377 = vld [vmem:[%s2 + $0x40] sm:$0xff]
        %v378 = vld [vmem:[%s2 + $0x48] sm:$0xff]
        %v379 = vld [vmem:[%s2 + $0x50] sm:$0xff]
        %v380 = vld [vmem:[%s2 + $0x58] sm:$0xff]
        %v381 = vld [vmem:[%s2 + $0x60] sm:$0xff]
        %v382 = vld [vmem:[%s2 + $0x68] sm:$0xff]
        %v383 = vld [vmem:[%s2 + $0x70] sm:$0xff]
        %v384 = vld [vmem:[%s2 + $0x78] sm:$0xff]
        %v385 = vld [vmem:[%s2 + $0x80] sm:$0xff]
        %v386 = vld [vmem:[%s2 + $0x88] sm:$0xff]
        %v387 = vld [vmem:[%s2 + $0x90] sm:$0xff]
        %v388 = vld [vmem:[%s2 + $0x98] sm:$0xff]
        %v389 = vld [vmem:[%s2 + $0xa0] sm:$0xff]
        %v390 = vld [vmem:[%s2 + $0xa8] sm:$0xff]
        %v391 = vld [vmem:[%s2 + $0xb0] sm:$0xff]
        %v392 = vld [vmem:[%s2 + $0xb8] sm:$0xff]
        %v393 = vld [vmem:[%s2 + $0xc0] sm:$0xff]
        %v394 = vld [vmem:[%s2 + $0xc8] sm:$0xff]
        %v395 = vld [vmem:[%s2 + $0xd0] sm:$0xff]
        %v396 = vld [vmem:[%s2 + $0xd8] sm:$0xff]
        %v397 = vld [vmem:[%s2 + $0xe0] sm:$0xff]
        %v398 = vld [vmem:[%s2 + $0xe8] sm:$0xff]
        %v399 = vld [vmem:[%s2 + $0xf0] sm:$0xff]
        %v400 = vld [vmem:[%s2 + $0xf8] sm:$0xff]
        %v401 = vld [vmem:[%s2 + $0x100] sm:$0xff]
        %v402 = vld [vmem:[%s2 + $0x108] sm:$0xff]
        %v403 = vld [vmem:[%s2 + $0x110] sm:$0xff]
        %v404 = vld [vmem:[%s2 + $0x118] sm:$0xff]
        %v405 = vld [vmem:[%s2 + $0x120] sm:$0xff]
        %v406 = vld [vmem:[%s2 + $0x128] sm:$0xff]
        %v407 = vld [vmem:[%s2 + $0x130] sm:$0xff]
        %v408 = vld [vmem:[%s2 + $0x138] sm:$0xff]
        %v409 = vld [vmem:[%s2 + $0x140] sm:$0xff]
        %v410 = vld [vmem:[%s2 + $0x148] sm:$0xff]
        %v411 = vld [vmem:[%s2 + $0x150] sm:$0xff]
        %v412 = vld [vmem:[%s2 + $0x158] sm:$0xff]
        %v413 = vld [vmem:[%s2 + $0x160] sm:$0xff]
        %v414 = vld [vmem:[%s2 + $0x168] sm:$0xff]
        %v415 = vld [vmem:[%s2 + $0x170] sm:$0xff]
        %v416 = vld [vmem:[%s2 + $0x178] sm:$0xff]
        %v417 = vld [vmem:[%s2 + $0x180] sm:$0xff]
        %v418 = vld [vmem:[%s2 + $0x188] sm:$0xff]
        %v419 = vld [vmem:[%s2 + $0x190] sm:$0xff]
        %v420 = vld [vmem:[%s2 + $0x198] sm:$0xff]
        %v421 = vld [vmem:[%s2 + $0x1a0] sm:$0xff]
        %v422 = vld [vmem:[%s2 + $0x1a8] sm:$0xff]
        %v423 = vld [vmem:[%s2 + $0x1b0] sm:$0xff]
        %v424 = vld [vmem:[%s2 + $0x1b8] sm:$0xff]
        %v425 = vld [vmem:[%s2 + $0x1c0] sm:$0xff]
        %v426 = vld [vmem:[%s2 + $0x1c8] sm:$0xff]
        %v427 = vld [vmem:[%s2 + $0x1d0] sm:$0xff]
        %v428 = vld [vmem:[%s2 + $0x1d8] sm:$0xff]
        %v429 = vld [vmem:[%s2 + $0x1e0] sm:$0xff]
        %v430 = vld [vmem:[%s2 + $0x1e8] sm:$0xff]
        %v431 = vld [vmem:[%s2 + $0x1f0] sm:$0xff]
        %v432 = vld [vmem:[%s2 + $0x1f8] sm:$0xff]
        %v433 = vld [vmem:[%s2 + $0x200] sm:$0xff]
        %v434 = vld [vmem:[%s2 + $0x208] sm:$0xff]
        %v435 = vld [vmem:[%s2 + $0x210] sm:$0xff]
        %v436 = vld [vmem:[%s2 + $0x218] sm:$0xff]
        %v437 = vld [vmem:[%s2 + $0x220] sm:$0xff]
        %v438 = vld [vmem:[%s2 + $0x228] sm:$0xff]
        %v439 = vld [vmem:[%s2 + $0x230] sm:$0xff]
        %v440 = vld [vmem:[%s2 + $0x238] sm:$0xff]
        %v441 = vld [vmem:[%s2 + $0x240] sm:$0xff]
        %v442 = vld [vmem:[%s2 + $0x248] sm:$0xff]
        %v443 = vld [vmem:[%s2 + $0x250] sm:$0xff]
        %v444 = vld [vmem:[%s2 + $0x258] sm:$0xff]
        %v445 = vld [vmem:[%s2 + $0x260] sm:$0xff]
        %v446 = vld [vmem:[%s2 + $0x268] sm:$0xff]
        %v447 = vld [vmem:[%s2 + $0x270] sm:$0xff]
        %v448 = vld [vmem:[%s2 + $0x278] sm:$0xff]
        %v449 = vld [vmem:[%s2 + $0x280] sm:$0xff]
        %v450 = vld [vmem:[%s2 + $0x288] sm:$0xff]
        %v451 = vld [vmem:[%s2 + $0x290] sm:$0xff]
        %v452 = vld [vmem:[%s2 + $0x298] sm:$0xff]
        %v453 = vld [vmem:[%s2 + $0x2a0] sm:$0xff]
        %v454 = vld [vmem:[%s2 + $0x2a8] sm:$0xff]
        %v455 = vld [vmem:[%s2 + $0x2b0] sm:$0xff]
        %v456 = vld [vmem:[%s2 + $0x2b8] sm:$0xff]
        %v457 = vld [vmem:[%s2 + $0x2c0] sm:$0xff]
        %v458 = vld [vmem:[%s2 + $0x2c8] sm:$0xff]
        %v459 = vld [vmem:[%s2 + $0x2d0] sm:$0xff]
        %v460 = vld [vmem:[%s2 + $0x2d8] sm:$0xff]
        %v461 = vld [vmem:[%s2 + $0x2e0] sm:$0xff]
        %v462 = vld [vmem:[%s2 + $0x2e8] sm:$0xff]
        %v463 = vld [vmem:[%s2 + $0x2f0] sm:$0xff]
        %v464 = vld [vmem:[%s2 + $0x2f8] sm:$0xff]
        %v465 = vld [vmem:[%s2 + $0x300] sm:$0xff]
        %v466 = vld [vmem:[%s2 + $0x308] sm:$0xff]
        %v467 = vld [vmem:[%s2 + $0x310] sm:$0xff]
        %v468 = vld [vmem:[%s2 + $0x318] sm:$0xff]
        %v469 = vld [vmem:[%s2 + $0x320] sm:$0xff]
        %v470 = vld [vmem:[%s2 + $0x328] sm:$0xff]
        %v471 = vld [vmem:[%s2 + $0x330] sm:$0xff]
        %v472 = vld [vmem:[%s2 + $0x338] sm:$0xff]
        %v473 = vld [vmem:[%s2 + $0x340] sm:$0xff]
        %v474 = vld [vmem:[%s2 + $0x348] sm:$0xff]
        %v475 = vld [vmem:[%s2 + $0x350] sm:$0xff]
        %v476 = vld [vmem:[%s2 + $0x358] sm:$0xff]
        %v477 = vld [vmem:[%s2 + $0x360] sm:$0xff]
        %v478 = vld [vmem:[%s2 + $0x368] sm:$0xff]
        %v479 = vld [vmem:[%s2 + $0x370] sm:$0xff]
        %v480 = vld [vmem:[%s2 + $0x378] sm:$0xff]
        %v481 = vld [vmem:[%s2 + $0x380] sm:$0xff]
        %v482 = vld [vmem:[%s2 + $0x388] sm:$0xff]
        %v483 = vld [vmem:[%s2 + $0x390] sm:$0xff]
        %v484 = vld [vmem:[%s2 + $0x398] sm:$0xff]
        %v485 = vld [vmem:[%s2 + $0x3a0] sm:$0xff]
        %v486 = vld [vmem:[%s2 + $0x3a8] sm:$0xff]
        %v487 = vld [vmem:[%s2 + $0x3b0] sm:$0xff]
        %v488 = vld [vmem:[%s2 + $0x3b8] sm:$0xff]
        %v489 = vld [vmem:[%s2 + $0x3c0] sm:$0xff]
        %v490 = vld [vmem:[%s2 + $0x3c8] sm:$0xff]
        %v491 = vld [vmem:[%s2 + $0x3d0] sm:$0xff]
        %v492 = vld [vmem:[%s2 + $0x3d8] sm:$0xff]
        %v493 = vld [vmem:[%s2 + $0x3e0] sm:$0xff]
        %v494 = vld [vmem:[%s2 + $0x3e8] sm:$0xff]
        %v495 = vld [vmem:[%s2 + $0x3f0] sm:$0xff]
        %v496 = vld [vmem:[%s2 + $0x3f8] sm:$0xff]
        %498 = vset.pattern.permute.xlu0 0
        %499 = vperm.xlu0 %498, %v369
        %v500 = vpop.permute.xlu0 %499
        %503 = vset.pattern.permute.xlu0 0
        %504 = vperm.xlu0 %503, %v370
        %v505 = vpop.permute.xlu0 %504
        %508 = vset.pattern.permute.xlu0 0
        %509 = vperm.xlu0 %508, %v371
        %v510 = vpop.permute.xlu0 %509
        %513 = vset.pattern.permute.xlu0 0
        %514 = vperm.xlu0 %513, %v372
        %v515 = vpop.permute.xlu0 %514
        %518 = vset.pattern.permute.xlu0 0
        %519 = vperm.xlu0 %518, %v373
        %v520 = vpop.permute.xlu0 %519
        %523 = vset.pattern.permute.xlu0 0
        %524 = vperm.xlu0 %523, %v374
        %v525 = vpop.permute.xlu0 %524
        %528 = vset.pattern.permute.xlu0 0
        %529 = vperm.xlu0 %528, %v375
        %v530 = vpop.permute.xlu0 %529
        %533 = vset.pattern.permute.xlu0 0
        %534 = vperm.xlu0 %533, %v376
        %v535 = vpop.permute.xlu0 %534
        %538 = vset.pattern.permute.xlu0 0
        %539 = vperm.xlu0 %538, %v377
        %v540 = vpop.permute.xlu0 %539
        %543 = vset.pattern.permute.xlu0 0
        %544 = vperm.xlu0 %543, %v378
        %v545 = vpop.permute.xlu0 %544
        %548 = vset.pattern.permute.xlu0 0
        %549 = vperm.xlu0 %548, %v379
        %v550 = vpop.permute.xlu0 %549
        %553 = vset.pattern.permute.xlu0 0
        %554 = vperm.xlu0 %553, %v380
        %v555 = vpop.permute.xlu0 %554
        %558 = vset.pattern.permute.xlu0 0
        %559 = vperm.xlu0 %558, %v381
        %v560 = vpop.permute.xlu0 %559
        %563 = vset.pattern.permute.xlu0 0
        %564 = vperm.xlu0 %563, %v382
        %v565 = vpop.permute.xlu0 %564
        %568 = vset.pattern.permute.xlu0 0
        %569 = vperm.xlu0 %568, %v383
        %v570 = vpop.permute.xlu0 %569
        %573 = vset.pattern.permute.xlu0 0
        %574 = vperm.xlu0 %573, %v384
        %v575 = vpop.permute.xlu0 %574
        %578 = vset.pattern.permute.xlu0 0
        %579 = vperm.xlu0 %578, %v385
        %v580 = vpop.permute.xlu0 %579
        %583 = vset.pattern.permute.xlu0 0
        %584 = vperm.xlu0 %583, %v386
        %v585 = vpop.permute.xlu0 %584
        %588 = vset.pattern.permute.xlu0 0
        %589 = vperm.xlu0 %588, %v387
        %v590 = vpop.permute.xlu0 %589
        %593 = vset.pattern.permute.xlu0 0
        %594 = vperm.xlu0 %593, %v388
        %v595 = vpop.permute.xlu0 %594
        %598 = vset.pattern.permute.xlu0 0
        %599 = vperm.xlu0 %598, %v389
        %v600 = vpop.permute.xlu0 %599
        %603 = vset.pattern.permute.xlu0 0
        %604 = vperm.xlu0 %603, %v390
        %v605 = vpop.permute.xlu0 %604
        %608 = vset.pattern.permute.xlu0 0
        %609 = vperm.xlu0 %608, %v391
        %v610 = vpop.permute.xlu0 %609
        %613 = vset.pattern.permute.xlu0 0
        %614 = vperm.xlu0 %613, %v392
        %v615 = vpop.permute.xlu0 %614
        %618 = vset.pattern.permute.xlu0 0
        %619 = vperm.xlu0 %618, %v393
        %v620 = vpop.permute.xlu0 %619
        %623 = vset.pattern.permute.xlu0 0
        %624 = vperm.xlu0 %623, %v394
        %v625 = vpop.permute.xlu0 %624
        %628 = vset.pattern.permute.xlu0 0
        %629 = vperm.xlu0 %628, %v395
        %v630 = vpop.permute.xlu0 %629
        %633 = vset.pattern.permute.xlu0 0
        %634 = vperm.xlu0 %633, %v396
        %v635 = vpop.permute.xlu0 %634
        %638 = vset.pattern.permute.xlu0 0
        %639 = vperm.xlu0 %638, %v397
        %v640 = vpop.permute.xlu0 %639
        %643 = vset.pattern.permute.xlu0 0
        %644 = vperm.xlu0 %643, %v398
        %v645 = vpop.permute.xlu0 %644
        %648 = vset.pattern.permute.xlu0 0
        %649 = vperm.xlu0 %648, %v399
        %v650 = vpop.permute.xlu0 %649
        %653 = vset.pattern.permute.xlu0 0
        %654 = vperm.xlu0 %653, %v400
        %v655 = vpop.permute.xlu0 %654
        %658 = vset.pattern.permute.xlu0 0
        %659 = vperm.xlu0 %658, %v401
        %v660 = vpop.permute.xlu0 %659
        %663 = vset.pattern.permute.xlu0 0
        %664 = vperm.xlu0 %663, %v402
        %v665 = vpop.permute.xlu0 %664
        %668 = vset.pattern.permute.xlu0 0
        %669 = vperm.xlu0 %668, %v403
        %v670 = vpop.permute.xlu0 %669
        %673 = vset.pattern.permute.xlu0 0
        %674 = vperm.xlu0 %673, %v404
        %v675 = vpop.permute.xlu0 %674
        %678 = vset.pattern.permute.xlu0 0
        %679 = vperm.xlu0 %678, %v405
        %v680 = vpop.permute.xlu0 %679
        %683 = vset.pattern.permute.xlu0 0
        %684 = vperm.xlu0 %683, %v406
        %v685 = vpop.permute.xlu0 %684
        %688 = vset.pattern.permute.xlu0 0
        %689 = vperm.xlu0 %688, %v407
        %v690 = vpop.permute.xlu0 %689
        %693 = vset.pattern.permute.xlu0 0
        %694 = vperm.xlu0 %693, %v408
        %v695 = vpop.permute.xlu0 %694
        %698 = vset.pattern.permute.xlu0 0
        %699 = vperm.xlu0 %698, %v409
        %v700 = vpop.permute.xlu0 %699
        %703 = vset.pattern.permute.xlu0 0
        %704 = vperm.xlu0 %703, %v410
        %v705 = vpop.permute.xlu0 %704
        %708 = vset.pattern.permute.xlu0 0
        %709 = vperm.xlu0 %708, %v411
        %v710 = vpop.permute.xlu0 %709
        %713 = vset.pattern.permute.xlu0 0
        %714 = vperm.xlu0 %713, %v412
        %v715 = vpop.permute.xlu0 %714
        %718 = vset.pattern.permute.xlu0 0
        %719 = vperm.xlu0 %718, %v413
        %v720 = vpop.permute.xlu0 %719
        %723 = vset.pattern.permute.xlu0 0
        %724 = vperm.xlu0 %723, %v414
        %v725 = vpop.permute.xlu0 %724
        %728 = vset.pattern.permute.xlu0 0
        %729 = vperm.xlu0 %728, %v415
        %v730 = vpop.permute.xlu0 %729
        %733 = vset.pattern.permute.xlu0 0
        %734 = vperm.xlu0 %733, %v416
        %v735 = vpop.permute.xlu0 %734
        %738 = vset.pattern.permute.xlu0 0
        %739 = vperm.xlu0 %738, %v417
        %v740 = vpop.permute.xlu0 %739
        %743 = vset.pattern.permute.xlu0 0
        %744 = vperm.xlu0 %743, %v418
        %v745 = vpop.permute.xlu0 %744
        %748 = vset.pattern.permute.xlu0 0
        %749 = vperm.xlu0 %748, %v419
        %v750 = vpop.permute.xlu0 %749
        %753 = vset.pattern.permute.xlu0 0
        %754 = vperm.xlu0 %753, %v420
        %v755 = vpop.permute.xlu0 %754
        %758 = vset.pattern.permute.xlu0 0
        %759 = vperm.xlu0 %758, %v421
        %v760 = vpop.permute.xlu0 %759
        %763 = vset.pattern.permute.xlu0 0
        %764 = vperm.xlu0 %763, %v422
        %v765 = vpop.permute.xlu0 %764
        %768 = vset.pattern.permute.xlu0 0
        %769 = vperm.xlu0 %768, %v423
        %v770 = vpop.permute.xlu0 %769
        %773 = vset.pattern.permute.xlu0 0
        %774 = vperm.xlu0 %773, %v424
        %v775 = vpop.permute.xlu0 %774
        %778 = vset.pattern.permute.xlu0 0
        %779 = vperm.xlu0 %778, %v425
        %v780 = vpop.permute.xlu0 %779
        %783 = vset.pattern.permute.xlu0 0
        %784 = vperm.xlu0 %783, %v426
        %v785 = vpop.permute.xlu0 %784
        %788 = vset.pattern.permute.xlu0 0
        %789 = vperm.xlu0 %788, %v427
        %v790 = vpop.permute.xlu0 %789
        %793 = vset.pattern.permute.xlu0 0
        %794 = vperm.xlu0 %793, %v428
        %v795 = vpop.permute.xlu0 %794
        %798 = vset.pattern.permute.xlu0 0
        %799 = vperm.xlu0 %798, %v429
        %v800 = vpop.permute.xlu0 %799
        %803 = vset.pattern.permute.xlu0 0
        %804 = vperm.xlu0 %803, %v430
        %v805 = vpop.permute.xlu0 %804
        %808 = vset.pattern.permute.xlu0 0
        %809 = vperm.xlu0 %808, %v431
        %v810 = vpop.permute.xlu0 %809
        %813 = vset.pattern.permute.xlu0 0
        %814 = vperm.xlu0 %813, %v432
        %v815 = vpop.permute.xlu0 %814
        %818 = vset.pattern.permute.xlu0 0
        %819 = vperm.xlu0 %818, %v433
        %v820 = vpop.permute.xlu0 %819
        %823 = vset.pattern.permute.xlu0 0
        %824 = vperm.xlu0 %823, %v434
        %v825 = vpop.permute.xlu0 %824
        %828 = vset.pattern.permute.xlu0 0
        %829 = vperm.xlu0 %828, %v435
        %v830 = vpop.permute.xlu0 %829
        %833 = vset.pattern.permute.xlu0 0
        %834 = vperm.xlu0 %833, %v436
        %v835 = vpop.permute.xlu0 %834
        %838 = vset.pattern.permute.xlu0 0
        %839 = vperm.xlu0 %838, %v437
        %v840 = vpop.permute.xlu0 %839
        %843 = vset.pattern.permute.xlu0 0
        %844 = vperm.xlu0 %843, %v438
        %v845 = vpop.permute.xlu0 %844
        %848 = vset.pattern.permute.xlu0 0
        %849 = vperm.xlu0 %848, %v439
        %v850 = vpop.permute.xlu0 %849
        %853 = vset.pattern.permute.xlu0 0
        %854 = vperm.xlu0 %853, %v440
        %v855 = vpop.permute.xlu0 %854
        %858 = vset.pattern.permute.xlu0 0
        %859 = vperm.xlu0 %858, %v441
        %v860 = vpop.permute.xlu0 %859
        %863 = vset.pattern.permute.xlu0 0
        %864 = vperm.xlu0 %863, %v442
        %v865 = vpop.permute.xlu0 %864
        %868 = vset.pattern.permute.xlu0 0
        %869 = vperm.xlu0 %868, %v443
        %v870 = vpop.permute.xlu0 %869
        %873 = vset.pattern.permute.xlu0 0
        %874 = vperm.xlu0 %873, %v444
        %v875 = vpop.permute.xlu0 %874
        %878 = vset.pattern.permute.xlu0 0
        %879 = vperm.xlu0 %878, %v445
        %v880 = vpop.permute.xlu0 %879
        %883 = vset.pattern.permute.xlu0 0
        %884 = vperm.xlu0 %883, %v446
        %v885 = vpop.permute.xlu0 %884
        %888 = vset.pattern.permute.xlu0 0
        %889 = vperm.xlu0 %888, %v447
        %v890 = vpop.permute.xlu0 %889
        %893 = vset.pattern.permute.xlu0 0
        %894 = vperm.xlu0 %893, %v448
        %v895 = vpop.permute.xlu0 %894
        %898 = vset.pattern.permute.xlu0 0
        %899 = vperm.xlu0 %898, %v449
        %v900 = vpop.permute.xlu0 %899
        %903 = vset.pattern.permute.xlu0 0
        %904 = vperm.xlu0 %903, %v450
        %v905 = vpop.permute.xlu0 %904
        %908 = vset.pattern.permute.xlu0 0
        %909 = vperm.xlu0 %908, %v451
        %v910 = vpop.permute.xlu0 %909
        %913 = vset.pattern.permute.xlu0 0
        %914 = vperm.xlu0 %913, %v452
        %v915 = vpop.permute.xlu0 %914
        %918 = vset.pattern.permute.xlu0 0
        %919 = vperm.xlu0 %918, %v453
        %v920 = vpop.permute.xlu0 %919
        %923 = vset.pattern.permute.xlu0 0
        %924 = vperm.xlu0 %923, %v454
        %v925 = vpop.permute.xlu0 %924
        %928 = vset.pattern.permute.xlu0 0
        %929 = vperm.xlu0 %928, %v455
        %v930 = vpop.permute.xlu0 %929
        %933 = vset.pattern.permute.xlu0 0
        %934 = vperm.xlu0 %933, %v456
        %v935 = vpop.permute.xlu0 %934
        %938 = vset.pattern.permute.xlu0 0
        %939 = vperm.xlu0 %938, %v457
        %v940 = vpop.permute.xlu0 %939
        %943 = vset.pattern.permute.xlu0 0
        %944 = vperm.xlu0 %943, %v458
        %v945 = vpop.permute.xlu0 %944
        %948 = vset.pattern.permute.xlu0 0
        %949 = vperm.xlu0 %948, %v459
        %v950 = vpop.permute.xlu0 %949
        %953 = vset.pattern.permute.xlu0 0
        %954 = vperm.xlu0 %953, %v460
        %v955 = vpop.permute.xlu0 %954
        %958 = vset.pattern.permute.xlu0 0
        %959 = vperm.xlu0 %958, %v461
        %v960 = vpop.permute.xlu0 %959
        %963 = vset.pattern.permute.xlu0 0
        %964 = vperm.xlu0 %963, %v462
        %v965 = vpop.permute.xlu0 %964
        %968 = vset.pattern.permute.xlu0 0
        %969 = vperm.xlu0 %968, %v463
        %v970 = vpop.permute.xlu0 %969
        %973 = vset.pattern.permute.xlu0 0
        %974 = vperm.xlu0 %973, %v464
        %v975 = vpop.permute.xlu0 %974
        %978 = vset.pattern.permute.xlu0 0
        %979 = vperm.xlu0 %978, %v465
        %v980 = vpop.permute.xlu0 %979
        %983 = vset.pattern.permute.xlu0 0
        %984 = vperm.xlu0 %983, %v466
        %v985 = vpop.permute.xlu0 %984
        %988 = vset.pattern.permute.xlu0 0
        %989 = vperm.xlu0 %988, %v467
        %v990 = vpop.permute.xlu0 %989
        %993 = vset.pattern.permute.xlu0 0
        %994 = vperm.xlu0 %993, %v468
        %v995 = vpop.permute.xlu0 %994
        %998 = vset.pattern.permute.xlu0 0
        %999 = vperm.xlu0 %998, %v469
        %v1000 = vpop.permute.xlu0 %999
        %1003 = vset.pattern.permute.xlu0 0
        %1004 = vperm.xlu0 %1003, %v470
        %v1005 = vpop.permute.xlu0 %1004
        %1008 = vset.pattern.permute.xlu0 0
        %1009 = vperm.xlu0 %1008, %v471
        %v1010 = vpop.permute.xlu0 %1009
        %1013 = vset.pattern.permute.xlu0 0
        %1014 = vperm.xlu0 %1013, %v472
        %v1015 = vpop.permute.xlu0 %1014
        %1018 = vset.pattern.permute.xlu0 0
        %1019 = vperm.xlu0 %1018, %v473
        %v1020 = vpop.permute.xlu0 %1019
        %1023 = vset.pattern.permute.xlu0 0
        %1024 = vperm.xlu0 %1023, %v474
        %v1025 = vpop.permute.xlu0 %1024
        %1028 = vset.pattern.permute.xlu0 0
        %1029 = vperm.xlu0 %1028, %v475
        %v1030 = vpop.permute.xlu0 %1029
        %1033 = vset.pattern.permute.xlu0 0
        %1034 = vperm.xlu0 %1033, %v476
        %v1035 = vpop.permute.xlu0 %1034
        %1038 = vset.pattern.permute.xlu0 0
        %1039 = vperm.xlu0 %1038, %v477
        %v1040 = vpop.permute.xlu0 %1039
        %1043 = vset.pattern.permute.xlu0 0
        %1044 = vperm.xlu0 %1043, %v478
        %v1045 = vpop.permute.xlu0 %1044
        %1048 = vset.pattern.permute.xlu0 0
        %1049 = vperm.xlu0 %1048, %v479
        %v1050 = vpop.permute.xlu0 %1049
        %1053 = vset.pattern.permute.xlu0 0
        %1054 = vperm.xlu0 %1053, %v480
        %v1055 = vpop.permute.xlu0 %1054
        %1058 = vset.pattern.permute.xlu0 0
        %1059 = vperm.xlu0 %1058, %v481
        %v1060 = vpop.permute.xlu0 %1059
        %1063 = vset.pattern.permute.xlu0 0
        %1064 = vperm.xlu0 %1063, %v482
        %v1065 = vpop.permute.xlu0 %1064
        %1068 = vset.pattern.permute.xlu0 0
        %1069 = vperm.xlu0 %1068, %v483
        %v1070 = vpop.permute.xlu0 %1069
        %1073 = vset.pattern.permute.xlu0 0
        %1074 = vperm.xlu0 %1073, %v484
        %v1075 = vpop.permute.xlu0 %1074
        %1078 = vset.pattern.permute.xlu0 0
        %1079 = vperm.xlu0 %1078, %v485
        %v1080 = vpop.permute.xlu0 %1079
        %1083 = vset.pattern.permute.xlu0 0
        %1084 = vperm.xlu0 %1083, %v486
        %v1085 = vpop.permute.xlu0 %1084
        %1088 = vset.pattern.permute.xlu0 0
        %1089 = vperm.xlu0 %1088, %v487
        %v1090 = vpop.permute.xlu0 %1089
        %1093 = vset.pattern.permute.xlu0 0
        %1094 = vperm.xlu0 %1093, %v488
        %v1095 = vpop.permute.xlu0 %1094
        %1098 = vset.pattern.permute.xlu0 0
        %1099 = vperm.xlu0 %1098, %v489
        %v1100 = vpop.permute.xlu0 %1099
        %1103 = vset.pattern.permute.xlu0 0
        %1104 = vperm.xlu0 %1103, %v490
        %v1105 = vpop.permute.xlu0 %1104
        %1108 = vset.pattern.permute.xlu0 0
        %1109 = vperm.xlu0 %1108, %v491
        %v1110 = vpop.permute.xlu0 %1109
        %1113 = vset.pattern.permute.xlu0 0
        %1114 = vperm.xlu0 %1113, %v492
        %v1115 = vpop.permute.xlu0 %1114
        %1118 = vset.pattern.permute.xlu0 0
        %1119 = vperm.xlu0 %1118, %v493
        %v1120 = vpop.permute.xlu0 %1119
        %1123 = vset.pattern.permute.xlu0 0
        %1124 = vperm.xlu0 %1123, %v494
        %v1125 = vpop.permute.xlu0 %1124
        %1128 = vset.pattern.permute.xlu0 0
        %1129 = vperm.xlu0 %1128, %v495
        %v1130 = vpop.permute.xlu0 %1129
        %1133 = vset.pattern.permute.xlu0 0
        %1134 = vperm.xlu0 %1133, %v496
        %v1135 = vpop.permute.xlu0 %1134
        %v1265 = vunpack.c.l.b16 %v225
        %v1266 = vunpack.c.l.b16 %v226
        %v1267 = vunpack.c.l.b16 %v227
        %v1268 = vunpack.c.l.b16 %v228
        %v1269 = vunpack.c.l.b16 %v229
        %v1270 = vunpack.c.l.b16 %v230
        %v1271 = vunpack.c.l.b16 %v231
        %v1272 = vunpack.c.l.b16 %v232
        %v1273 = vunpack.c.l.b16 %v233
        %v1274 = vunpack.c.l.b16 %v234
        %v1275 = vunpack.c.l.b16 %v235
        %v1276 = vunpack.c.l.b16 %v236
        %v1277 = vunpack.c.l.b16 %v237
        %v1278 = vunpack.c.l.b16 %v238
        %v1279 = vunpack.c.l.b16 %v239
        %v1280 = vunpack.c.l.b16 %v240
        %v1281 = vunpack.c.l.b16 %v241
        %v1282 = vunpack.c.l.b16 %v242
        %v1283 = vunpack.c.l.b16 %v243
        %v1284 = vunpack.c.l.b16 %v244
        %v1285 = vunpack.c.l.b16 %v245
        %v1286 = vunpack.c.l.b16 %v246
        %v1287 = vunpack.c.l.b16 %v247
        %v1288 = vunpack.c.l.b16 %v248
        %v1289 = vunpack.c.l.b16 %v249
        %v1290 = vunpack.c.l.b16 %v250
        %v1291 = vunpack.c.l.b16 %v251
        %v1292 = vunpack.c.l.b16 %v252
        %v1293 = vunpack.c.l.b16 %v253
        %v1294 = vunpack.c.l.b16 %v254
        %v1295 = vunpack.c.l.b16 %v255
        %v1296 = vunpack.c.l.b16 %v256
        %v1297 = vunpack.c.l.b16 %v257
        %v1298 = vunpack.c.l.b16 %v258
        %v1299 = vunpack.c.l.b16 %v259
        %v1300 = vunpack.c.l.b16 %v260
        %v1301 = vunpack.c.l.b16 %v261
        %v1302 = vunpack.c.l.b16 %v262
        %v1303 = vunpack.c.l.b16 %v263
        %v1304 = vunpack.c.l.b16 %v264
        %v1305 = vunpack.c.l.b16 %v265
        %v1306 = vunpack.c.l.b16 %v266
        %v1307 = vunpack.c.l.b16 %v267
        %v1308 = vunpack.c.l.b16 %v268
        %v1309 = vunpack.c.l.b16 %v269
        %v1310 = vunpack.c.l.b16 %v270
        %v1311 = vunpack.c.l.b16 %v271
        %v1312 = vunpack.c.l.b16 %v272
        %v1313 = vunpack.c.l.b16 %v273
        %v1314 = vunpack.c.l.b16 %v274
        %v1315 = vunpack.c.l.b16 %v275
        %v1316 = vunpack.c.l.b16 %v276
        %v1317 = vunpack.c.l.b16 %v277
        %v1318 = vunpack.c.l.b16 %v278
        %v1319 = vunpack.c.l.b16 %v279
        %v1320 = vunpack.c.l.b16 %v280
        %v1321 = vunpack.c.l.b16 %v281
        %v1322 = vunpack.c.l.b16 %v282
        %v1323 = vunpack.c.l.b16 %v283
        %v1324 = vunpack.c.l.b16 %v284
        %v1325 = vunpack.c.l.b16 %v285
        %v1326 = vunpack.c.l.b16 %v286
        %v1327 = vunpack.c.l.b16 %v287
        %v1328 = vunpack.c.l.b16 %v288
        %v1329 = vunpack.c.l.b16 %v289
        %v1330 = vunpack.c.l.b16 %v290
        %v1331 = vunpack.c.l.b16 %v291
        %v1332 = vunpack.c.l.b16 %v292
        %v1333 = vunpack.c.l.b16 %v293
        %v1334 = vunpack.c.l.b16 %v294
        %v1335 = vunpack.c.l.b16 %v295
        %v1336 = vunpack.c.l.b16 %v296
        %v1337 = vunpack.c.l.b16 %v297
        %v1338 = vunpack.c.l.b16 %v298
        %v1339 = vunpack.c.l.b16 %v299
        %v1340 = vunpack.c.l.b16 %v300
        %v1341 = vunpack.c.l.b16 %v301
        %v1342 = vunpack.c.l.b16 %v302
        %v1343 = vunpack.c.l.b16 %v303
        %v1344 = vunpack.c.l.b16 %v304
        %v1345 = vunpack.c.l.b16 %v305
        %v1346 = vunpack.c.l.b16 %v306
        %v1347 = vunpack.c.l.b16 %v307
        %v1348 = vunpack.c.l.b16 %v308
        %v1349 = vunpack.c.l.b16 %v309
        %v1350 = vunpack.c.l.b16 %v310
        %v1351 = vunpack.c.l.b16 %v311
        %v1352 = vunpack.c.l.b16 %v312
        %v1353 = vunpack.c.l.b16 %v313
        %v1354 = vunpack.c.l.b16 %v314
        %v1355 = vunpack.c.l.b16 %v315
        %v1356 = vunpack.c.l.b16 %v316
        %v1357 = vunpack.c.l.b16 %v317
        %v1358 = vunpack.c.l.b16 %v318
        %v1359 = vunpack.c.l.b16 %v319
        %v1360 = vunpack.c.l.b16 %v320
        %v1361 = vunpack.c.l.b16 %v321
        %v1362 = vunpack.c.l.b16 %v322
        %v1363 = vunpack.c.l.b16 %v323
        %v1364 = vunpack.c.l.b16 %v324
        %v1365 = vunpack.c.l.b16 %v325
        %v1366 = vunpack.c.l.b16 %v326
        %v1367 = vunpack.c.l.b16 %v327
        %v1368 = vunpack.c.l.b16 %v328
        %v1369 = vunpack.c.l.b16 %v329
        %v1370 = vunpack.c.l.b16 %v330
        %v1371 = vunpack.c.l.b16 %v331
        %v1372 = vunpack.c.l.b16 %v332
        %v1373 = vunpack.c.l.b16 %v333
        %v1374 = vunpack.c.l.b16 %v334
        %v1375 = vunpack.c.l.b16 %v335
        %v1376 = vunpack.c.l.b16 %v336
        %v1377 = vunpack.c.l.b16 %v337
        %v1378 = vunpack.c.l.b16 %v338
        %v1379 = vunpack.c.l.b16 %v339
        %v1380 = vunpack.c.l.b16 %v340
        %v1381 = vunpack.c.l.b16 %v341
        %v1382 = vunpack.c.l.b16 %v342
        %v1383 = vunpack.c.l.b16 %v343
        %v1384 = vunpack.c.l.b16 %v344
        %v1385 = vunpack.c.l.b16 %v345
        %v1386 = vunpack.c.l.b16 %v346
        %v1387 = vunpack.c.l.b16 %v347
        %v1388 = vunpack.c.l.b16 %v348
        %v1389 = vunpack.c.l.b16 %v349
        %v1390 = vunpack.c.l.b16 %v350
        %v1391 = vunpack.c.l.b16 %v351
        %v1392 = vunpack.c.l.b16 %v352
        %v1393 = vpack.c.b16 %v1266, %v1265
        %v1394 = vpack.c.b16 %v1268, %v1267
        %v1395 = vpack.c.b16 %v1270, %v1269
        %v1396 = vpack.c.b16 %v1272, %v1271
        %v1397 = vpack.c.b16 %v1274, %v1273
        %v1398 = vpack.c.b16 %v1276, %v1275
        %v1399 = vpack.c.b16 %v1278, %v1277
        %v1400 = vpack.c.b16 %v1280, %v1279
        %v1401 = vpack.c.b16 %v1282, %v1281
        %v1402 = vpack.c.b16 %v1284, %v1283
        %v1403 = vpack.c.b16 %v1286, %v1285
        %v1404 = vpack.c.b16 %v1288, %v1287
        %v1405 = vpack.c.b16 %v1290, %v1289
        %v1406 = vpack.c.b16 %v1292, %v1291
        %v1407 = vpack.c.b16 %v1294, %v1293
        %v1408 = vpack.c.b16 %v1296, %v1295
        %v1409 = vpack.c.b16 %v1298, %v1297
        %v1410 = vpack.c.b16 %v1300, %v1299
        %v1411 = vpack.c.b16 %v1302, %v1301
        %v1412 = vpack.c.b16 %v1304, %v1303
        %v1413 = vpack.c.b16 %v1306, %v1305
        %v1414 = vpack.c.b16 %v1308, %v1307
        %v1415 = vpack.c.b16 %v1310, %v1309
        %v1416 = vpack.c.b16 %v1312, %v1311
        %v1417 = vpack.c.b16 %v1314, %v1313
        %v1418 = vpack.c.b16 %v1316, %v1315
        %v1419 = vpack.c.b16 %v1318, %v1317
        %v1420 = vpack.c.b16 %v1320, %v1319
        %v1421 = vpack.c.b16 %v1322, %v1321
        %v1422 = vpack.c.b16 %v1324, %v1323
        %v1423 = vpack.c.b16 %v1326, %v1325
        %v1424 = vpack.c.b16 %v1328, %v1327
        %v1425 = vpack.c.b16 %v1330, %v1329
        %v1426 = vpack.c.b16 %v1332, %v1331
        %v1427 = vpack.c.b16 %v1334, %v1333
        %v1428 = vpack.c.b16 %v1336, %v1335
        %v1429 = vpack.c.b16 %v1338, %v1337
        %v1430 = vpack.c.b16 %v1340, %v1339
        %v1431 = vpack.c.b16 %v1342, %v1341
        %v1432 = vpack.c.b16 %v1344, %v1343
        %v1433 = vpack.c.b16 %v1346, %v1345
        %v1434 = vpack.c.b16 %v1348, %v1347
        %v1435 = vpack.c.b16 %v1350, %v1349
        %v1436 = vpack.c.b16 %v1352, %v1351
        %v1437 = vpack.c.b16 %v1354, %v1353
        %v1438 = vpack.c.b16 %v1356, %v1355
        %v1439 = vpack.c.b16 %v1358, %v1357
        %v1440 = vpack.c.b16 %v1360, %v1359
        %v1441 = vpack.c.b16 %v1362, %v1361
        %v1442 = vpack.c.b16 %v1364, %v1363
        %v1443 = vpack.c.b16 %v1366, %v1365
        %v1444 = vpack.c.b16 %v1368, %v1367
        %v1445 = vpack.c.b16 %v1370, %v1369
        %v1446 = vpack.c.b16 %v1372, %v1371
        %v1447 = vpack.c.b16 %v1374, %v1373
        %v1448 = vpack.c.b16 %v1376, %v1375
        %v1449 = vpack.c.b16 %v1378, %v1377
        %v1450 = vpack.c.b16 %v1380, %v1379
        %v1451 = vpack.c.b16 %v1382, %v1381
        %v1452 = vpack.c.b16 %v1384, %v1383
        %v1453 = vpack.c.b16 %v1386, %v1385
        %v1454 = vpack.c.b16 %v1388, %v1387
        %v1455 = vpack.c.b16 %v1390, %v1389
        %v1456 = vpack.c.b16 %v1392, %v1391
        %v1473 = vunpack.c.l.b16 %v353
        %v1474 = vunpack.c.l.b16 %v354
        %v1475 = vunpack.c.l.b16 %v355
        %v1476 = vunpack.c.l.b16 %v356
        %v1477 = vunpack.c.l.b16 %v357
        %v1478 = vunpack.c.l.b16 %v358
        %v1479 = vunpack.c.l.b16 %v359
        %v1480 = vunpack.c.l.b16 %v360
        %v1481 = vunpack.c.l.b16 %v361
        %v1482 = vunpack.c.l.b16 %v362
        %v1483 = vunpack.c.l.b16 %v363
        %v1484 = vunpack.c.l.b16 %v364
        %v1485 = vunpack.c.l.b16 %v365
        %v1486 = vunpack.c.l.b16 %v366
        %v1487 = vunpack.c.l.b16 %v367
        %v1488 = vunpack.c.l.b16 %v368
        %v1489 = vpack.c.b16 %v1474, %v1473
        %v1490 = vpack.c.b16 %v1476, %v1475
        %v1491 = vpack.c.b16 %v1478, %v1477
        %v1492 = vpack.c.b16 %v1480, %v1479
        %v1493 = vpack.c.b16 %v1482, %v1481
        %v1494 = vpack.c.b16 %v1484, %v1483
        %v1495 = vpack.c.b16 %v1486, %v1485
        %v1496 = vpack.c.b16 %v1488, %v1487
        %vm1497 = vcmask 80896
        %v1499 = vsel %vm1497, %v1393, 0
        %v1502 = vsel %vm1497, %v1394, 0
        %v1505 = vsel %vm1497, %v1395, 0
        %v1508 = vsel %vm1497, %v1396, 0
        %v1511 = vsel %vm1497, %v1397, 0
        %v1514 = vsel %vm1497, %v1398, 0
        %v1517 = vsel %vm1497, %v1399, 0
        %v1520 = vsel %vm1497, %v1400, 0
        %v1523 = vsel %vm1497, %v1401, 0
        %v1526 = vsel %vm1497, %v1402, 0
        %v1529 = vsel %vm1497, %v1403, 0
        %v1532 = vsel %vm1497, %v1404, 0
        %v1535 = vsel %vm1497, %v1405, 0
        %v1538 = vsel %vm1497, %v1406, 0
        %v1541 = vsel %vm1497, %v1407, 0
        %v1544 = vsel %vm1497, %v1408, 0
        %v1547 = vsel %vm1497, %v1409, 0
        %v1550 = vsel %vm1497, %v1410, 0
        %v1553 = vsel %vm1497, %v1411, 0
        %v1556 = vsel %vm1497, %v1412, 0
        %v1559 = vsel %vm1497, %v1413, 0
        %v1562 = vsel %vm1497, %v1414, 0
        %v1565 = vsel %vm1497, %v1415, 0
        %v1568 = vsel %vm1497, %v1416, 0
        %v1571 = vsel %vm1497, %v1417, 0
        %v1574 = vsel %vm1497, %v1418, 0
        %v1577 = vsel %vm1497, %v1419, 0
        %v1580 = vsel %vm1497, %v1420, 0
        %v1583 = vsel %vm1497, %v1421, 0
        %v1586 = vsel %vm1497, %v1422, 0
        %v1589 = vsel %vm1497, %v1423, 0
        %v1592 = vsel %vm1497, %v1424, 0
        %v1595 = vsel %vm1497, %v1425, 0
        %v1598 = vsel %vm1497, %v1426, 0
        %v1601 = vsel %vm1497, %v1427, 0
        %v1604 = vsel %vm1497, %v1428, 0
        %v1607 = vsel %vm1497, %v1429, 0
        %v1610 = vsel %vm1497, %v1430, 0
        %v1613 = vsel %vm1497, %v1431, 0
        %v1616 = vsel %vm1497, %v1432, 0
        %v1619 = vsel %vm1497, %v1433, 0
        %v1622 = vsel %vm1497, %v1434, 0
        %v1625 = vsel %vm1497, %v1435, 0
        %v1628 = vsel %vm1497, %v1436, 0
        %v1631 = vsel %vm1497, %v1437, 0
        %v1634 = vsel %vm1497, %v1438, 0
        %v1637 = vsel %vm1497, %v1439, 0
        %v1640 = vsel %vm1497, %v1440, 0
        %v1643 = vsel %vm1497, %v1441, 0
        %v1646 = vsel %vm1497, %v1442, 0
        %v1649 = vsel %vm1497, %v1443, 0
        %v1652 = vsel %vm1497, %v1444, 0
        %v1655 = vsel %vm1497, %v1445, 0
        %v1658 = vsel %vm1497, %v1446, 0
        %v1661 = vsel %vm1497, %v1447, 0
        %v1664 = vsel %vm1497, %v1448, 0
        %v1667 = vsel %vm1497, %v1449, 0
        %v1670 = vsel %vm1497, %v1450, 0
        %v1673 = vsel %vm1497, %v1451, 0
        %v1676 = vsel %vm1497, %v1452, 0
        %v1679 = vsel %vm1497, %v1453, 0
        %v1682 = vsel %vm1497, %v1454, 0
        %v1685 = vsel %vm1497, %v1455, 0
        %v1688 = vsel %vm1497, %v1456, 0
        %v1691 = vsel %vm1497, %v1489, 0
        %v1694 = vsel %vm1497, %v1490, 0
        %v1697 = vsel %vm1497, %v1491, 0
        %v1700 = vsel %vm1497, %v1492, 0
        %v1703 = vsel %vm1497, %v1493, 0
        %v1706 = vsel %vm1497, %v1494, 0
        %v1709 = vsel %vm1497, %v1495, 0
        %v1712 = vsel %vm1497, %v1496, 0
        %1714 = vmatpush.bf16.xpose.msra.mxu0 %v1712
        %1715 = vmatpush.bf16.xpose.msra.mxu0 %v1709
        %1716 = vmatpush.bf16.xpose.msra.mxu0 %v1706
        %1717 = vmatpush.bf16.xpose.msra.mxu0 %v1703
        %1718 = vmatpush.bf16.xpose.msra.mxu0 %v1700
        %1719 = vmatpush.bf16.xpose.msra.mxu0 %v1697
        %1720 = vmatpush.bf16.xpose.msra.mxu0 %v1694
        %1721 = vmatpush.bf16.xpose.msra.mxu0 %v1691
        %1722 = vmatmul.bf16.gmra.mxu0 %v1499
        %v1723 = vpop.f32.mrf.mxu0
        %v1724 = vadd.f32 %v500, %v1723
        %v1725 = vpop.f32.mrf.mxu0
        %v1726 = vadd.f32 %v505, %v1725
        %1727 = vmatmul.bf16.gmra.mxu0 %v1502
        %v1728 = vpop.f32.mrf.mxu0
        %v1729 = vadd.f32 %v510, %v1728
        %v1730 = vpop.f32.mrf.mxu0
        %v1731 = vadd.f32 %v515, %v1730
        %1732 = vmatmul.bf16.gmra.mxu0 %v1505
        %v1733 = vpop.f32.mrf.mxu0
        %v1734 = vadd.f32 %v520, %v1733
        %v1735 = vpop.f32.mrf.mxu0
        %v1736 = vadd.f32 %v525, %v1735
        %1737 = vmatmul.bf16.gmra.mxu0 %v1508
        %v1738 = vpop.f32.mrf.mxu0
        %v1739 = vadd.f32 %v530, %v1738
        %v1740 = vpop.f32.mrf.mxu0
        %v1741 = vadd.f32 %v535, %v1740
        %1742 = vmatmul.bf16.gmra.mxu0 %v1511
        %v1743 = vpop.f32.mrf.mxu0
        %v1744 = vadd.f32 %v540, %v1743
        %v1745 = vpop.f32.mrf.mxu0
        %v1746 = vadd.f32 %v545, %v1745
        %1747 = vmatmul.bf16.gmra.mxu0 %v1514
        %v1748 = vpop.f32.mrf.mxu0
        %v1749 = vadd.f32 %v550, %v1748
        %v1750 = vpop.f32.mrf.mxu0
        %v1751 = vadd.f32 %v555, %v1750
        %1752 = vmatmul.bf16.gmra.mxu0 %v1517
        %v1753 = vpop.f32.mrf.mxu0
        %v1754 = vadd.f32 %v560, %v1753
        %v1755 = vpop.f32.mrf.mxu0
        %v1756 = vadd.f32 %v565, %v1755
        %1757 = vmatmul.bf16.gmra.mxu0 %v1520
        %v1758 = vpop.f32.mrf.mxu0
        %v1759 = vadd.f32 %v570, %v1758
        %v1760 = vpop.f32.mrf.mxu0
        %v1761 = vadd.f32 %v575, %v1760
        %1762 = vmatmul.bf16.gmra.mxu0 %v1523
        %v1763 = vpop.f32.mrf.mxu0
        %v1764 = vadd.f32 %v580, %v1763
        %v1765 = vpop.f32.mrf.mxu0
        %v1766 = vadd.f32 %v585, %v1765
        %1767 = vmatmul.bf16.gmra.mxu0 %v1526
        %v1768 = vpop.f32.mrf.mxu0
        %v1769 = vadd.f32 %v590, %v1768
        %v1770 = vpop.f32.mrf.mxu0
        %v1771 = vadd.f32 %v595, %v1770
        %1772 = vmatmul.bf16.gmra.mxu0 %v1529
        %v1773 = vpop.f32.mrf.mxu0
        %v1774 = vadd.f32 %v600, %v1773
        %v1775 = vpop.f32.mrf.mxu0
        %v1776 = vadd.f32 %v605, %v1775
        %1777 = vmatmul.bf16.gmra.mxu0 %v1532
        %v1778 = vpop.f32.mrf.mxu0
        %v1779 = vadd.f32 %v610, %v1778
        %v1780 = vpop.f32.mrf.mxu0
        %v1781 = vadd.f32 %v615, %v1780
        %1782 = vmatmul.bf16.gmra.mxu0 %v1535
        %v1783 = vpop.f32.mrf.mxu0
        %v1784 = vadd.f32 %v620, %v1783
        %v1785 = vpop.f32.mrf.mxu0
        %v1786 = vadd.f32 %v625, %v1785
        %1787 = vmatmul.bf16.gmra.mxu0 %v1538
        %v1788 = vpop.f32.mrf.mxu0
        %v1789 = vadd.f32 %v630, %v1788
        %v1790 = vpop.f32.mrf.mxu0
        %v1791 = vadd.f32 %v635, %v1790
        %1792 = vmatmul.bf16.gmra.mxu0 %v1541
        %v1793 = vpop.f32.mrf.mxu0
        %v1794 = vadd.f32 %v640, %v1793
        %v1795 = vpop.f32.mrf.mxu0
        %v1796 = vadd.f32 %v645, %v1795
        %1797 = vmatmul.bf16.gmra.mxu0 %v1544
        %v1798 = vpop.f32.mrf.mxu0
        %v1799 = vadd.f32 %v650, %v1798
        %v1800 = vpop.f32.mrf.mxu0
        %v1801 = vadd.f32 %v655, %v1800
        %1802 = vmatmul.bf16.gmra.mxu0 %v1547
        %v1803 = vpop.f32.mrf.mxu0
        %v1804 = vadd.f32 %v660, %v1803
        %v1805 = vpop.f32.mrf.mxu0
        %v1806 = vadd.f32 %v665, %v1805
        %1807 = vmatmul.bf16.gmra.mxu0 %v1550
        %v1808 = vpop.f32.mrf.mxu0
        %v1809 = vadd.f32 %v670, %v1808
        %v1810 = vpop.f32.mrf.mxu0
        %v1811 = vadd.f32 %v675, %v1810
        %1812 = vmatmul.bf16.gmra.mxu0 %v1553
        %v1813 = vpop.f32.mrf.mxu0
        %v1814 = vadd.f32 %v680, %v1813
        %v1815 = vpop.f32.mrf.mxu0
        %v1816 = vadd.f32 %v685, %v1815
        %1817 = vmatmul.bf16.gmra.mxu0 %v1556
        %v1818 = vpop.f32.mrf.mxu0
        %v1819 = vadd.f32 %v690, %v1818
        %v1820 = vpop.f32.mrf.mxu0
        %v1821 = vadd.f32 %v695, %v1820
        %1822 = vmatmul.bf16.gmra.mxu0 %v1559
        %v1823 = vpop.f32.mrf.mxu0
        %v1824 = vadd.f32 %v700, %v1823
        %v1825 = vpop.f32.mrf.mxu0
        %v1826 = vadd.f32 %v705, %v1825
        %1827 = vmatmul.bf16.gmra.mxu0 %v1562
        %v1828 = vpop.f32.mrf.mxu0
        %v1829 = vadd.f32 %v710, %v1828
        %v1830 = vpop.f32.mrf.mxu0
        %v1831 = vadd.f32 %v715, %v1830
        %1832 = vmatmul.bf16.gmra.mxu0 %v1565
        %v1833 = vpop.f32.mrf.mxu0
        %v1834 = vadd.f32 %v720, %v1833
        %v1835 = vpop.f32.mrf.mxu0
        %v1836 = vadd.f32 %v725, %v1835
        %1837 = vmatmul.bf16.gmra.mxu0 %v1568
        %v1838 = vpop.f32.mrf.mxu0
        %v1839 = vadd.f32 %v730, %v1838
        %v1840 = vpop.f32.mrf.mxu0
        %v1841 = vadd.f32 %v735, %v1840
        %1842 = vmatmul.bf16.gmra.mxu0 %v1571
        %v1843 = vpop.f32.mrf.mxu0
        %v1844 = vadd.f32 %v740, %v1843
        %v1845 = vpop.f32.mrf.mxu0
        %v1846 = vadd.f32 %v745, %v1845
        %1847 = vmatmul.bf16.gmra.mxu0 %v1574
        %v1848 = vpop.f32.mrf.mxu0
        %v1849 = vadd.f32 %v750, %v1848
        %v1850 = vpop.f32.mrf.mxu0
        %v1851 = vadd.f32 %v755, %v1850
        %1852 = vmatmul.bf16.gmra.mxu0 %v1577
        %v1853 = vpop.f32.mrf.mxu0
        %v1854 = vadd.f32 %v760, %v1853
        %v1855 = vpop.f32.mrf.mxu0
        %v1856 = vadd.f32 %v765, %v1855
        %1857 = vmatmul.bf16.gmra.mxu0 %v1580
        %v1858 = vpop.f32.mrf.mxu0
        %v1859 = vadd.f32 %v770, %v1858
        %v1860 = vpop.f32.mrf.mxu0
        %v1861 = vadd.f32 %v775, %v1860
        %1862 = vmatmul.bf16.gmra.mxu0 %v1583
        %v1863 = vpop.f32.mrf.mxu0
        %v1864 = vadd.f32 %v780, %v1863
        %v1865 = vpop.f32.mrf.mxu0
        %v1866 = vadd.f32 %v785, %v1865
        %1867 = vmatmul.bf16.gmra.mxu0 %v1586
        %v1868 = vpop.f32.mrf.mxu0
        %v1869 = vadd.f32 %v790, %v1868
        %v1870 = vpop.f32.mrf.mxu0
        %v1871 = vadd.f32 %v795, %v1870
        %1872 = vmatmul.bf16.gmra.mxu0 %v1589
        %v1873 = vpop.f32.mrf.mxu0
        %v1874 = vadd.f32 %v800, %v1873
        %v1875 = vpop.f32.mrf.mxu0
        %v1876 = vadd.f32 %v805, %v1875
        %1877 = vmatmul.bf16.gmra.mxu0 %v1592
        %v1878 = vpop.f32.mrf.mxu0
        %v1879 = vadd.f32 %v810, %v1878
        %v1880 = vpop.f32.mrf.mxu0
        %v1881 = vadd.f32 %v815, %v1880
        %1882 = vmatmul.bf16.gmra.mxu0 %v1595
        %v1883 = vpop.f32.mrf.mxu0
        %v1884 = vadd.f32 %v820, %v1883
        %v1885 = vpop.f32.mrf.mxu0
        %v1886 = vadd.f32 %v825, %v1885
        %1887 = vmatmul.bf16.gmra.mxu0 %v1598
        %v1888 = vpop.f32.mrf.mxu0
        %v1889 = vadd.f32 %v830, %v1888
        %v1890 = vpop.f32.mrf.mxu0
        %v1891 = vadd.f32 %v835, %v1890
        %1892 = vmatmul.bf16.gmra.mxu0 %v1601
        %v1893 = vpop.f32.mrf.mxu0
        %v1894 = vadd.f32 %v840, %v1893
        %v1895 = vpop.f32.mrf.mxu0
        %v1896 = vadd.f32 %v845, %v1895
        %1897 = vmatmul.bf16.gmra.mxu0 %v1604
        %v1898 = vpop.f32.mrf.mxu0
        %v1899 = vadd.f32 %v850, %v1898
        %v1900 = vpop.f32.mrf.mxu0
        %v1901 = vadd.f32 %v855, %v1900
        %1902 = vmatmul.bf16.gmra.mxu0 %v1607
        %v1903 = vpop.f32.mrf.mxu0
        %v1904 = vadd.f32 %v860, %v1903
        %v1905 = vpop.f32.mrf.mxu0
        %v1906 = vadd.f32 %v865, %v1905
        %1907 = vmatmul.bf16.gmra.mxu0 %v1610
        %v1908 = vpop.f32.mrf.mxu0
        %v1909 = vadd.f32 %v870, %v1908
        %v1910 = vpop.f32.mrf.mxu0
        %v1911 = vadd.f32 %v875, %v1910
        %1912 = vmatmul.bf16.gmra.mxu0 %v1613
        %v1913 = vpop.f32.mrf.mxu0
        %v1914 = vadd.f32 %v880, %v1913
        %v1915 = vpop.f32.mrf.mxu0
        %v1916 = vadd.f32 %v885, %v1915
        %1917 = vmatmul.bf16.gmra.mxu0 %v1616
        %v1918 = vpop.f32.mrf.mxu0
        %v1919 = vadd.f32 %v890, %v1918
        %v1920 = vpop.f32.mrf.mxu0
        %v1921 = vadd.f32 %v895, %v1920
        %1922 = vmatmul.bf16.gmra.mxu0 %v1619
        %v1923 = vpop.f32.mrf.mxu0
        %v1924 = vadd.f32 %v900, %v1923
        %v1925 = vpop.f32.mrf.mxu0
        %v1926 = vadd.f32 %v905, %v1925
        %1927 = vmatmul.bf16.gmra.mxu0 %v1622
        %v1928 = vpop.f32.mrf.mxu0
        %v1929 = vadd.f32 %v910, %v1928
        %v1930 = vpop.f32.mrf.mxu0
        %v1931 = vadd.f32 %v915, %v1930
        %1932 = vmatmul.bf16.gmra.mxu0 %v1625
        %v1933 = vpop.f32.mrf.mxu0
        %v1934 = vadd.f32 %v920, %v1933
        %v1935 = vpop.f32.mrf.mxu0
        %v1936 = vadd.f32 %v925, %v1935
        %1937 = vmatmul.bf16.gmra.mxu0 %v1628
        %v1938 = vpop.f32.mrf.mxu0
        %v1939 = vadd.f32 %v930, %v1938
        %v1940 = vpop.f32.mrf.mxu0
        %v1941 = vadd.f32 %v935, %v1940
        %1942 = vmatmul.bf16.gmra.mxu0 %v1631
        %v1943 = vpop.f32.mrf.mxu0
        %v1944 = vadd.f32 %v940, %v1943
        %v1945 = vpop.f32.mrf.mxu0
        %v1946 = vadd.f32 %v945, %v1945
        %1947 = vmatmul.bf16.gmra.mxu0 %v1634
        %v1948 = vpop.f32.mrf.mxu0
        %v1949 = vadd.f32 %v950, %v1948
        %v1950 = vpop.f32.mrf.mxu0
        %v1951 = vadd.f32 %v955, %v1950
        %1952 = vmatmul.bf16.gmra.mxu0 %v1637
        %v1953 = vpop.f32.mrf.mxu0
        %v1954 = vadd.f32 %v960, %v1953
        %v1955 = vpop.f32.mrf.mxu0
        %v1956 = vadd.f32 %v965, %v1955
        %1957 = vmatmul.bf16.gmra.mxu0 %v1640
        %v1958 = vpop.f32.mrf.mxu0
        %v1959 = vadd.f32 %v970, %v1958
        %v1960 = vpop.f32.mrf.mxu0
        %v1961 = vadd.f32 %v975, %v1960
        %1962 = vmatmul.bf16.gmra.mxu0 %v1643
        %v1963 = vpop.f32.mrf.mxu0
        %v1964 = vadd.f32 %v980, %v1963
        %v1965 = vpop.f32.mrf.mxu0
        %v1966 = vadd.f32 %v985, %v1965
        %1967 = vmatmul.bf16.gmra.mxu0 %v1646
        %v1968 = vpop.f32.mrf.mxu0
        %v1969 = vadd.f32 %v990, %v1968
        %v1970 = vpop.f32.mrf.mxu0
        %v1971 = vadd.f32 %v995, %v1970
        %1972 = vmatmul.bf16.gmra.mxu0 %v1649
        %v1973 = vpop.f32.mrf.mxu0
        %v1974 = vadd.f32 %v1000, %v1973
        %v1975 = vpop.f32.mrf.mxu0
        %v1976 = vadd.f32 %v1005, %v1975
        %1977 = vmatmul.bf16.gmra.mxu0 %v1652
        %v1978 = vpop.f32.mrf.mxu0
        %v1979 = vadd.f32 %v1010, %v1978
        %v1980 = vpop.f32.mrf.mxu0
        %v1981 = vadd.f32 %v1015, %v1980
        %1982 = vmatmul.bf16.gmra.mxu0 %v1655
        %v1983 = vpop.f32.mrf.mxu0
        %v1984 = vadd.f32 %v1020, %v1983
        %v1985 = vpop.f32.mrf.mxu0
        %v1986 = vadd.f32 %v1025, %v1985
        %1987 = vmatmul.bf16.gmra.mxu0 %v1658
        %v1988 = vpop.f32.mrf.mxu0
        %v1989 = vadd.f32 %v1030, %v1988
        %v1990 = vpop.f32.mrf.mxu0
        %v1991 = vadd.f32 %v1035, %v1990
        %1992 = vmatmul.bf16.gmra.mxu0 %v1661
        %v1993 = vpop.f32.mrf.mxu0
        %v1994 = vadd.f32 %v1040, %v1993
        %v1995 = vpop.f32.mrf.mxu0
        %v1996 = vadd.f32 %v1045, %v1995
        %1997 = vmatmul.bf16.gmra.mxu0 %v1664
        %v1998 = vpop.f32.mrf.mxu0
        %v1999 = vadd.f32 %v1050, %v1998
        %v2000 = vpop.f32.mrf.mxu0
        %v2001 = vadd.f32 %v1055, %v2000
        %2002 = vmatmul.bf16.gmra.mxu0 %v1667
        %v2003 = vpop.f32.mrf.mxu0
        %v2004 = vadd.f32 %v1060, %v2003
        %v2005 = vpop.f32.mrf.mxu0
        %v2006 = vadd.f32 %v1065, %v2005
        %2007 = vmatmul.bf16.gmra.mxu0 %v1670
        %v2008 = vpop.f32.mrf.mxu0
        %v2009 = vadd.f32 %v1070, %v2008
        %v2010 = vpop.f32.mrf.mxu0
        %v2011 = vadd.f32 %v1075, %v2010
        %2012 = vmatmul.bf16.gmra.mxu0 %v1673
        %v2013 = vpop.f32.mrf.mxu0
        %v2014 = vadd.f32 %v1080, %v2013
        %v2015 = vpop.f32.mrf.mxu0
        %v2016 = vadd.f32 %v1085, %v2015
        %2017 = vmatmul.bf16.gmra.mxu0 %v1676
        %v2018 = vpop.f32.mrf.mxu0
        %v2019 = vadd.f32 %v1090, %v2018
        %v2020 = vpop.f32.mrf.mxu0
        %v2021 = vadd.f32 %v1095, %v2020
        %2022 = vmatmul.bf16.gmra.mxu0 %v1679
        %v2023 = vpop.f32.mrf.mxu0
        %v2024 = vadd.f32 %v1100, %v2023
        %v2025 = vpop.f32.mrf.mxu0
        %v2026 = vadd.f32 %v1105, %v2025
        %2027 = vmatmul.bf16.gmra.mxu0 %v1682
        %v2028 = vpop.f32.mrf.mxu0
        %v2029 = vadd.f32 %v1110, %v2028
        %v2030 = vpop.f32.mrf.mxu0
        %v2031 = vadd.f32 %v1115, %v2030
        %2032 = vmatmul.bf16.gmra.mxu0 %v1685
        %v2033 = vpop.f32.mrf.mxu0
        %v2034 = vadd.f32 %v1120, %v2033
        %v2035 = vpop.f32.mrf.mxu0
        %v2036 = vadd.f32 %v1125, %v2035
        %2037 = vmatmul.bf16.gmra.mxu0 %v1688
        %v2038 = vpop.f32.mrf.mxu0
        %v2039 = vadd.f32 %v1130, %v2038
        %v2040 = vpop.f32.mrf.mxu0
        %v2041 = vadd.f32 %v1135, %v2040
        %2042 = vdwg.mxu0
        %v2043 = vmax.f32 %v1724, 0.0
        %v2044 = vmax.f32 %v1726, 0.0
        %v2045 = vmax.f32 %v1729, 0.0
        %v2046 = vmax.f32 %v1731, 0.0
        %v2047 = vmax.f32 %v1734, 0.0
        %v2048 = vmax.f32 %v1736, 0.0
        %v2049 = vmax.f32 %v1739, 0.0
        %v2050 = vmax.f32 %v1741, 0.0
        %v2051 = vmax.f32 %v1744, 0.0
        %v2052 = vmax.f32 %v1746, 0.0
        %v2053 = vmax.f32 %v1749, 0.0
        %v2054 = vmax.f32 %v1751, 0.0
        %v2055 = vmax.f32 %v1754, 0.0
        %v2056 = vmax.f32 %v1756, 0.0
        %v2057 = vmax.f32 %v1759, 0.0
        %v2058 = vmax.f32 %v1761, 0.0
        %v2059 = vmax.f32 %v1764, 0.0
        %v2060 = vmax.f32 %v1766, 0.0
        %v2061 = vmax.f32 %v1769, 0.0
        %v2062 = vmax.f32 %v1771, 0.0
        %v2063 = vmax.f32 %v1774, 0.0
        %v2064 = vmax.f32 %v1776, 0.0
        %v2065 = vmax.f32 %v1779, 0.0
        %v2066 = vmax.f32 %v1781, 0.0
        %v2067 = vmax.f32 %v1784, 0.0
        %v2068 = vmax.f32 %v1786, 0.0
        %v2069 = vmax.f32 %v1789, 0.0
        %v2070 = vmax.f32 %v1791, 0.0
        %v2071 = vmax.f32 %v1794, 0.0
        %v2072 = vmax.f32 %v1796, 0.0
        %v2073 = vmax.f32 %v1799, 0.0
        %v2074 = vmax.f32 %v1801, 0.0
        %v2075 = vmax.f32 %v1804, 0.0
        %v2076 = vmax.f32 %v1806, 0.0
        %v2077 = vmax.f32 %v1809, 0.0
        %v2078 = vmax.f32 %v1811, 0.0
        %v2079 = vmax.f32 %v1814, 0.0
        %v2080 = vmax.f32 %v1816, 0.0
        %v2081 = vmax.f32 %v1819, 0.0
        %v2082 = vmax.f32 %v1821, 0.0
        %v2083 = vmax.f32 %v1824, 0.0
        %v2084 = vmax.f32 %v1826, 0.0
        %v2085 = vmax.f32 %v1829, 0.0
        %v2086 = vmax.f32 %v1831, 0.0
        %v2087 = vmax.f32 %v1834, 0.0
        %v2088 = vmax.f32 %v1836, 0.0
        %v2089 = vmax.f32 %v1839, 0.0
        %v2090 = vmax.f32 %v1841, 0.0
        %v2091 = vmax.f32 %v1844, 0.0
        %v2092 = vmax.f32 %v1846, 0.0
        %v2093 = vmax.f32 %v1849, 0.0
        %v2094 = vmax.f32 %v1851, 0.0
        %v2095 = vmax.f32 %v1854, 0.0
        %v2096 = vmax.f32 %v1856, 0.0
        %v2097 = vmax.f32 %v1859, 0.0
        %v2098 = vmax.f32 %v1861, 0.0
        %v2099 = vmax.f32 %v1864, 0.0
        %v2100 = vmax.f32 %v1866, 0.0
        %v2101 = vmax.f32 %v1869, 0.0
        %v2102 = vmax.f32 %v1871, 0.0
        %v2103 = vmax.f32 %v1874, 0.0
        %v2104 = vmax.f32 %v1876, 0.0
        %v2105 = vmax.f32 %v1879, 0.0
        %v2106 = vmax.f32 %v1881, 0.0
        %v2107 = vmax.f32 %v1884, 0.0
        %v2108 = vmax.f32 %v1886, 0.0
        %v2109 = vmax.f32 %v1889, 0.0
        %v2110 = vmax.f32 %v1891, 0.0
        %v2111 = vmax.f32 %v1894, 0.0
        %v2112 = vmax.f32 %v1896, 0.0
        %v2113 = vmax.f32 %v1899, 0.0
        %v2114 = vmax.f32 %v1901, 0.0
        %v2115 = vmax.f32 %v1904, 0.0
        %v2116 = vmax.f32 %v1906, 0.0
        %v2117 = vmax.f32 %v1909, 0.0
        %v2118 = vmax.f32 %v1911, 0.0
        %v2119 = vmax.f32 %v1914, 0.0
        %v2120 = vmax.f32 %v1916, 0.0
        %v2121 = vmax.f32 %v1919, 0.0
        %v2122 = vmax.f32 %v1921, 0.0
        %v2123 = vmax.f32 %v1924, 0.0
        %v2124 = vmax.f32 %v1926, 0.0
        %v2125 = vmax.f32 %v1929, 0.0
        %v2126 = vmax.f32 %v1931, 0.0
        %v2127 = vmax.f32 %v1934, 0.0
        %v2128 = vmax.f32 %v1936, 0.0
        %v2129 = vmax.f32 %v1939, 0.0
        %v2130 = vmax.f32 %v1941, 0.0
        %v2131 = vmax.f32 %v1944, 0.0
        %v2132 = vmax.f32 %v1946, 0.0
        %v2133 = vmax.f32 %v1949, 0.0
        %v2134 = vmax.f32 %v1951, 0.0
        %v2135 = vmax.f32 %v1954, 0.0
        %v2136 = vmax.f32 %v1956, 0.0
        %v2137 = vmax.f32 %v1959, 0.0
        %v2138 = vmax.f32 %v1961, 0.0
        %v2139 = vmax.f32 %v1964, 0.0
        %v2140 = vmax.f32 %v1966, 0.0
        %v2141 = vmax.f32 %v1969, 0.0
        %v2142 = vmax.f32 %v1971, 0.0
        %v2143 = vmax.f32 %v1974, 0.0
        %v2144 = vmax.f32 %v1976, 0.0
        %v2145 = vmax.f32 %v1979, 0.0
        %v2146 = vmax.f32 %v1981, 0.0
        %v2147 = vmax.f32 %v1984, 0.0
        %v2148 = vmax.f32 %v1986, 0.0
        %v2149 = vmax.f32 %v1989, 0.0
        %v2150 = vmax.f32 %v1991, 0.0
        %v2151 = vmax.f32 %v1994, 0.0
        %v2152 = vmax.f32 %v1996, 0.0
        %v2153 = vmax.f32 %v1999, 0.0
        %v2154 = vmax.f32 %v2001, 0.0
        %v2155 = vmax.f32 %v2004, 0.0
        %v2156 = vmax.f32 %v2006, 0.0
        %v2157 = vmax.f32 %v2009, 0.0
        %v2158 = vmax.f32 %v2011, 0.0
        %v2159 = vmax.f32 %v2014, 0.0
        %v2160 = vmax.f32 %v2016, 0.0
        %v2161 = vmax.f32 %v2019, 0.0
        %v2162 = vmax.f32 %v2021, 0.0
        %v2163 = vmax.f32 %v2024, 0.0
        %v2164 = vmax.f32 %v2026, 0.0
        %v2165 = vmax.f32 %v2029, 0.0
        %v2166 = vmax.f32 %v2031, 0.0
        %v2167 = vmax.f32 %v2034, 0.0
        %v2168 = vmax.f32 %v2036, 0.0
        %v2169 = vmax.f32 %v2039, 0.0
        %v2170 = vmax.f32 %v2041, 0.0
        %v2171 = vld [vmem:[%s3] sm:$0xff]
        %s2172 = sld [smem:[#allocation2]]
        %v2173 = vstv %s2172
        %v2175 = vperm.slane %v2171, 0
        %v2176 = vperm.slane %v2171, 1
        %v2177 = vperm.slane %v2171, 2
        %v2178 = vperm.slane %v2171, 3
        %v2179 = vperm.slane %v2171, 4
        %v2180 = vperm.slane %v2171, 5
        %v2181 = vperm.slane %v2171, 6
        %v2182 = vperm.slane %v2171, 7
        %2191 = vmatpush.msra.mxu0 %v2058
        %2192 = vmatpush.msra.mxu0 %v2057
        %2193 = vmatpush.msra.mxu0 %v2056
        %2194 = vmatpush.msra.mxu0 %v2055
        %2195 = vmatpush.msra.mxu0 %v2054
        %2196 = vmatpush.msra.mxu0 %v2053
        %2197 = vmatpush.msra.mxu0 %v2052
        %2198 = vmatpush.msra.mxu0 %v2051
        %2199 = vmatpush.msra.mxu0 %v2050
        %2200 = vmatpush.msra.mxu0 %v2049
        %2201 = vmatpush.msra.mxu0 %v2048
        %2202 = vmatpush.msra.mxu0 %v2047
        %2203 = vmatpush.msra.mxu0 %v2046
        %2204 = vmatpush.msra.mxu0 %v2045
        %2205 = vmatpush.msra.mxu0 %v2044
        %2206 = vmatpush.msra.mxu0 %v2043
        %2207 = vmatmul.f32.gmra.mxu0 %v2175
        %v2208 = vpop.f32.mrf.mxu0
        %v2209 = vadd.f32 %v2173, %v2208
        %2210 = vdwg.mxu0
        %2211 = vmatpush.msra.mxu0 %v2074
        %2212 = vmatpush.msra.mxu0 %v2073
        %2213 = vmatpush.msra.mxu0 %v2072
        %2214 = vmatpush.msra.mxu0 %v2071
        %2215 = vmatpush.msra.mxu0 %v2070
        %2216 = vmatpush.msra.mxu0 %v2069
        %2217 = vmatpush.msra.mxu0 %v2068
        %2218 = vmatpush.msra.mxu0 %v2067
        %2219 = vmatpush.msra.mxu0 %v2066
        %2220 = vmatpush.msra.mxu0 %v2065
        %2221 = vmatpush.msra.mxu0 %v2064
        %2222 = vmatpush.msra.mxu0 %v2063
        %2223 = vmatpush.msra.mxu0 %v2062
        %2224 = vmatpush.msra.mxu0 %v2061
        %2225 = vmatpush.msra.mxu0 %v2060
        %2226 = vmatpush.msra.mxu0 %v2059
        %2227 = vmatmul.f32.gmra.mxu0 %v2176
        %v2228 = vpop.f32.mrf.mxu0
        %v2229 = vadd.f32 %v2209, %v2228
        %2230 = vdwg.mxu0
        %2231 = vmatpush.msra.mxu0 %v2090
        %2232 = vmatpush.msra.mxu0 %v2089
        %2233 = vmatpush.msra.mxu0 %v2088
        %2234 = vmatpush.msra.mxu0 %v2087
        %2235 = vmatpush.msra.mxu0 %v2086
        %2236 = vmatpush.msra.mxu0 %v2085
        %2237 = vmatpush.msra.mxu0 %v2084
        %2238 = vmatpush.msra.mxu0 %v2083
        %2239 = vmatpush.msra.mxu0 %v2082
        %2240 = vmatpush.msra.mxu0 %v2081
        %2241 = vmatpush.msra.mxu0 %v2080
        %2242 = vmatpush.msra.mxu0 %v2079
        %2243 = vmatpush.msra.mxu0 %v2078
        %2244 = vmatpush.msra.mxu0 %v2077
        %2245 = vmatpush.msra.mxu0 %v2076
        %2246 = vmatpush.msra.mxu0 %v2075
        %2247 = vmatmul.f32.gmra.mxu0 %v2177
        %v2248 = vpop.f32.mrf.mxu0
        %v2249 = vadd.f32 %v2229, %v2248
        %2250 = vdwg.mxu0
        %2251 = vmatpush.msra.mxu0 %v2106
        %2252 = vmatpush.msra.mxu0 %v2105
        %2253 = vmatpush.msra.mxu0 %v2104
        %2254 = vmatpush.msra.mxu0 %v2103
        %2255 = vmatpush.msra.mxu0 %v2102
        %2256 = vmatpush.msra.mxu0 %v2101
        %2257 = vmatpush.msra.mxu0 %v2100
        %2258 = vmatpush.msra.mxu0 %v2099
        %2259 = vmatpush.msra.mxu0 %v2098
        %2260 = vmatpush.msra.mxu0 %v2097
        %2261 = vmatpush.msra.mxu0 %v2096
        %2262 = vmatpush.msra.mxu0 %v2095
        %2263 = vmatpush.msra.mxu0 %v2094
        %2264 = vmatpush.msra.mxu0 %v2093
        %2265 = vmatpush.msra.mxu0 %v2092
        %2266 = vmatpush.msra.mxu0 %v2091
        %2267 = vmatmul.f32.gmra.mxu0 %v2178
        %v2268 = vpop.f32.mrf.mxu0
        %v2269 = vadd.f32 %v2249, %v2268
        %2270 = vdwg.mxu0
        %2271 = vmatpush.msra.mxu0 %v2122
        %2272 = vmatpush.msra.mxu0 %v2121
        %2273 = vmatpush.msra.mxu0 %v2120
        %2274 = vmatpush.msra.mxu0 %v2119
        %2275 = vmatpush.msra.mxu0 %v2118
        %2276 = vmatpush.msra.mxu0 %v2117
        %2277 = vmatpush.msra.mxu0 %v2116
        %2278 = vmatpush.msra.mxu0 %v2115
        %2279 = vmatpush.msra.mxu0 %v2114
        %2280 = vmatpush.msra.mxu0 %v2113
        %2281 = vmatpush.msra.mxu0 %v2112
        %2282 = vmatpush.msra.mxu0 %v2111
        %2283 = vmatpush.msra.mxu0 %v2110
        %2284 = vmatpush.msra.mxu0 %v2109
        %2285 = vmatpush.msra.mxu0 %v2108
        %2286 = vmatpush.msra.mxu0 %v2107
        %2287 = vmatmul.f32.gmra.mxu0 %v2179
        %v2288 = vpop.f32.mrf.mxu0
        %v2289 = vadd.f32 %v2269, %v2288
        %2290 = vdwg.mxu0
        %2291 = vmatpush.msra.mxu0 %v2138
        %2292 = vmatpush.msra.mxu0 %v2137
        %2293 = vmatpush.msra.mxu0 %v2136
        %2294 = vmatpush.msra.mxu0 %v2135
        %2295 = vmatpush.msra.mxu0 %v2134
        %2296 = vmatpush.msra.mxu0 %v2133
        %2297 = vmatpush.msra.mxu0 %v2132
        %2298 = vmatpush.msra.mxu0 %v2131
        %2299 = vmatpush.msra.mxu0 %v2130
        %2300 = vmatpush.msra.mxu0 %v2129
        %2301 = vmatpush.msra.mxu0 %v2128
        %2302 = vmatpush.msra.mxu0 %v2127
        %2303 = vmatpush.msra.mxu0 %v2126
        %2304 = vmatpush.msra.mxu0 %v2125
        %2305 = vmatpush.msra.mxu0 %v2124
        %2306 = vmatpush.msra.mxu0 %v2123
        %2307 = vmatmul.f32.gmra.mxu0 %v2180
        %v2308 = vpop.f32.mrf.mxu0
        %v2309 = vadd.f32 %v2289, %v2308
        %2310 = vdwg.mxu0
        %2311 = vmatpush.msra.mxu0 %v2154
        %2312 = vmatpush.msra.mxu0 %v2153
        %2313 = vmatpush.msra.mxu0 %v2152
        %2314 = vmatpush.msra.mxu0 %v2151
        %2315 = vmatpush.msra.mxu0 %v2150
        %2316 = vmatpush.msra.mxu0 %v2149
        %2317 = vmatpush.msra.mxu0 %v2148
        %2318 = vmatpush.msra.mxu0 %v2147
        %2319 = vmatpush.msra.mxu0 %v2146
        %2320 = vmatpush.msra.mxu0 %v2145
        %2321 = vmatpush.msra.mxu0 %v2144
        %2322 = vmatpush.msra.mxu0 %v2143
        %2323 = vmatpush.msra.mxu0 %v2142
        %2324 = vmatpush.msra.mxu0 %v2141
        %2325 = vmatpush.msra.mxu0 %v2140
        %2326 = vmatpush.msra.mxu0 %v2139
        %2327 = vmatmul.f32.gmra.mxu0 %v2181
        %v2328 = vpop.f32.mrf.mxu0
        %v2329 = vadd.f32 %v2309, %v2328
        %2330 = vdwg.mxu0
        %2331 = vmatpush.msra.mxu0 %v2170
        %2332 = vmatpush.msra.mxu0 %v2169
        %2333 = vmatpush.msra.mxu0 %v2168
        %2334 = vmatpush.msra.mxu0 %v2167
        %2335 = vmatpush.msra.mxu0 %v2166
        %2336 = vmatpush.msra.mxu0 %v2165
        %2337 = vmatpush.msra.mxu0 %v2164
        %2338 = vmatpush.msra.mxu0 %v2163
        %2339 = vmatpush.msra.mxu0 %v2162
        %2340 = vmatpush.msra.mxu0 %v2161
        %2341 = vmatpush.msra.mxu0 %v2160
        %2342 = vmatpush.msra.mxu0 %v2159
        %2343 = vmatpush.msra.mxu0 %v2158
        %2344 = vmatpush.msra.mxu0 %v2157
        %2345 = vmatpush.msra.mxu0 %v2156
        %2346 = vmatpush.msra.mxu0 %v2155
        %2347 = vmatmul.f32.gmra.mxu0 %v2182
        %v2348 = vpop.f32.mrf.mxu0
        %v2349 = vadd.f32 %v2329, %v2348
        %2350 = vdwg.mxu0
        %2351 = vst [vmem:[%s218] sm:$0x1] %v2349
        %s2352 = sand.u32 %s138, 1
        %s2353 = scalar_lea.sflag [#allocation4], %s2352
        %s2354 = sand.u32 %s138, 1
        %s2355 = scalar_lea.vmem [#allocation3], %s2354
        // Predicated region
        $region41: #{tpu_custom_call.1} parent=39 // pred_check
          %p2356 = pneg %p148
        $region42: #{tpu_custom_call.1} parent=39 // pred_check_branch
          %2358 = sbr.rel (%p2356) target = $region44
        $region43: #{tpu_custom_call.1} parent=39 // pred_region
          %2360 = vsyncadd %s2353, 0
          %s2361 = scalar_lea.hbm %s5, %s20
          %s2363 = sshll.u32 %s2355, 4
          %s2364 = int_to_ptr.vmem [resolvable:$true] %s2363
          %s2365 = sshll.u32 %s2361, 4
          %s2366 = int_to_ptr.hbm [resolvable:$true] %s2365
          %2368 = dma.vmem_to_hbm [thread:$0]  %s2364, 16, %s2366, %s2353
        $region44: #{tpu_custom_call.1} parent=39 // pred_fallthru
          _
      $region40: #{tpu_custom_call.1} parent=5 // pred_fallthru
        _
      %p2369 = scmp.le.s32.totalorder 2, %s15
      // Predicated region
      $region45: #{tpu_custom_call.1} parent=5 // pred_check
        %p2370 = pneg %p2369
      $region46: #{tpu_custom_call.1} parent=5 // pred_check_branch
        %2372 = sbr.rel (%p2370) target = $region48
      $region47: #{tpu_custom_call.1} parent=5 // pred_region
        %s2373 = ssub.s32 %s15, 2
        // Predicated region
        $region49: #{tpu_custom_call.1} parent=47 // pred_check
          %p2374 = pneg %p154
        $region50: #{tpu_custom_call.1} parent=47 // pred_check_branch
          %2376 = sbr.rel (%p2374) target = $region52
        $region51: #{tpu_custom_call.1} parent=47 // pred_region
          %s2377 = sand.u32 %s139, 1
          %s2378 = scalar_lea.sflag [#allocation4], %s2377
          %s2379 = sand.u32 %s139, 1
          %s2380 = scalar_lea.vmem [#allocation3], %s2379
          %2382 = dma.done %s2378, 16
        $region52: #{tpu_custom_call.1} parent=47 // pred_fallthru
          _
      $region48: #{tpu_custom_call.1} parent=5 // pred_fallthru
        _
    $region6: #{tpu_custom_call.1} parent=1 // loop_footer
      %s19 = sadd.s32 1, %s15
    $region7: #{tpu_custom_call.1} parent=1 // loop_footer_branch
      %14 = sbr.rel target = $region3
    $region8: #{tpu_custom_call.1} parent=1 // loop_exit
      _
    %2383 = vsyncpa [#allocation4], 1
    %s2384 = scalar_lea.sflag [#allocation4], 1
    %2385 = vsyncpa %s2384, 1

</llo_original>
